<compile_context>
chip_gen: v7x
topology: tpu7x:2x2x1
jax: 0.10.0
libtpu: 0.0.40
codegen_flags: <defaults>
</compile_context>

<pallas_src>
import numpy as np
import jax
import jax.numpy as jnp
from jax.experimental import pallas as pl
from jax.experimental.pallas import tpu as pltpu


# ----------------------------------------------------------------------------
# Fused kernel: GRU recurrence + FC head, everything in VMEM
# ----------------------------------------------------------------------------
def fused_gru_head_kernel(x_ref, h0_ref, wih_ref, whh_ref, bih_ref, bhh_ref,
                          w1_ref, b1_ref, w2_ref, b2_ref, out_ref):
    S, B, F = x_ref.shape
    H = h0_ref.shape[-1]

    w_ih = wih_ref[...]          # (F, 3H)
    b_ih = bih_ref[...]          # (1, 3H)
    w_hh = whh_ref[...]          # (H, 3H)
    b_hh = bhh_ref[...]          # (1, 3H)

    # ---- Input projections for every timestep, hoisted off the recurrence ----
    # Independent of h, so the MXU can issue them all before/alongside the
    # sequential chain; only h @ W_hh remains on the critical path.
    gis = [
        jnp.dot(x_ref[t], w_ih, preferred_element_type=jnp.float32) + b_ih
        for t in range(S)
    ]

    # ---- Recurrence (fully unrolled; S is small and static) ----
    h = h0_ref[...]              # (B, H)
    hs = []
    for t in range(S):
        gi = gis[t]                                                  # (B, 3H)
        gh = jnp.dot(h, w_hh, preferred_element_type=jnp.float32) + b_hh
        r = jax.nn.sigmoid(gi[:, :H] + gh[:, :H])
        z = jax.nn.sigmoid(gi[:, H:2 * H] + gh[:, H:2 * H])
        n = jnp.tanh(gi[:, 2 * H:] + r * gh[:, 2 * H:])
        h = (1.0 - z) * n + z * h
        hs.append(h)

    # (B, S*H): equivalent to stack(S,B,H) -> permute(B,S,H) -> view(B, S*H)
    hs_flat = jnp.concatenate(hs, axis=-1)

    # ---- Head: fc1 -> ReLU -> fc2 -> log_softmax ----
    a1 = jnp.dot(hs_flat, w1_ref[...], preferred_element_type=jnp.float32) + b1_ref[...]
    a1 = jnp.maximum(a1, 0.0)
    logits = jnp.dot(a1, w2_ref[...], preferred_element_type=jnp.float32) + b2_ref[...]
    m = jnp.max(logits, axis=-1, keepdims=True)
    s = logits - m
    lse = jnp.log(jnp.sum(jnp.exp(s), axis=-1, keepdims=True))
    out_ref[...] = s - lse


# ----------------------------------------------------------------------------
# Wrapper
# ----------------------------------------------------------------------------
def tidigits_gru_forward(x, params, h0):
    """x: (B, S, F) float32 -> (B, nb_classes) log-probabilities."""
    B, S, F = x.shape
    C = params["w2"].shape[1]
    x_tm = jnp.transpose(x, (1, 0, 2))          # (S, B, F) time-major (as in module)
    return pl.pallas_call(
        fused_gru_head_kernel,
        out_shape=jax.ShapeDtypeStruct((B, C), jnp.float32),
    )(x_tm, h0,
      params["w_ih"], params["w_hh"], params["b_ih"], params["b_hh"],
      params["w1"], params["b1"], params["w2"], params["b2"])


# ----------------------------------------------------------------------------
# Pure-JAX reference (same math) for verification
# ----------------------------------------------------------------------------
def reference_forward(x, params, h0):
    H = h0.shape[-1]

    def step(h, x_t):
        gi = x_t @ params["w_ih"] + params["b_ih"][0]
        gh = h @ params["w_hh"] + params["b_hh"][0]
        r = jax.nn.sigmoid(gi[:, :H] + gh[:, :H])
        z = jax.nn.sigmoid(gi[:, H:2 * H] + gh[:, H:2 * H])
        n = jnp.tanh(gi[:, 2 * H:] + r * gh[:, 2 * H:])
        h_new = (1.0 - z) * n + z * h
        return h_new, h_new

    x_tm = jnp.transpose(x, (1, 0, 2))
    _, hs = jax.lax.scan(step, h0, x_tm)
    hs = jnp.transpose(hs, (1, 0, 2)).reshape(x.shape[0], -1)
    a1 = jnp.maximum(hs @ params["w1"] + params["b1"][0], 0.0)
    logits = a1 @ params["w2"] + params["b2"][0]
    return jax.nn.log_softmax(logits, axis=-1)


# ----------------------------------------------------------------------------
# Main
# ----------------------------------------------------------------------------
if __name__ == "__main__":
    # Small shapes consistent with the module structure:
    #   GRU(features -> hidden), fc1(seq*hidden -> fc1_out), fc2(fc1_out -> 10)
    B, S, F, H = 2, 8, 16, 32
    FC1, C = 32, 10

    key = jax.random.PRNGKey(0)
    ks = jax.random.split(key, 12)

    def uniform(k, shape, bound):
        return jax.random.uniform(k, shape, jnp.float32, -bound, bound)

    k_gru = 1.0 / np.sqrt(H)
    params = {
        "w_ih": uniform(ks[0], (F, 3 * H), k_gru),       # weight_ih_l0^T
        "w_hh": uniform(ks[1], (H, 3 * H), k_gru),       # weight_hh_l0^T
        "b_ih": uniform(ks[2], (1, 3 * H), k_gru),
        "b_hh": uniform(ks[3], (1, 3 * H), k_gru),
        "w1": uniform(ks[4], (S * H, FC1), 1.0 / np.sqrt(S * H)),
        "b1": uniform(ks[5], (1, FC1), 1.0 / np.sqrt(S * H)),
        "w2": uniform(ks[6], (FC1, C), 1.0 / np.sqrt(FC1)),
        "b2": uniform(ks[7], (1, C), 1.0 / np.sqrt(FC1)),
    }

    x = jax.random.normal(ks[8], (B, S, F), jnp.float32)
    # Mirrors `hidden = Variable(torch.rand(1, batch, GRU_feat))` — uniform [0,1)
    # (RNG is done host-side with jax.random rather than in-kernel).
    h0 = jax.random.uniform(ks[9], (B, H), jnp.float32)

    out = tidigits_gru_forward(x, params, h0)
    out = jax.block_until_ready(out)

    ref = jax.block_until_ready(reference_forward(x, params, h0))
    np.testing.assert_allclose(np.asarray(out), np.asarray(ref),
                               rtol=1e-3, atol=1e-3)
    assert out.shape == (B, C)
    assert np.all(np.isfinite(np.asarray(out)))

    print("KERNEL_OK")
</pallas_src>

<mosaic_0001>
module attributes {stable_mosaic.version = 11 : i64} {
  func.func @fused_gru_head_kernel(%arg0: memref<8x2x16xf32, #tpu.memory_space<vmem>>, %arg1: memref<2x32xf32, #tpu.memory_space<vmem>>, %arg2: memref<16x96xf32, #tpu.memory_space<vmem>>, %arg3: memref<32x96xf32, #tpu.memory_space<vmem>>, %arg4: memref<1x96xf32, #tpu.memory_space<vmem>>, %arg5: memref<1x96xf32, #tpu.memory_space<vmem>>, %arg6: memref<256x32xf32, #tpu.memory_space<vmem>>, %arg7: memref<1x32xf32, #tpu.memory_space<vmem>>, %arg8: memref<32x10xf32, #tpu.memory_space<vmem>>, %arg9: memref<1x10xf32, #tpu.memory_space<vmem>>, %arg10: memref<2x10xf32, #tpu.memory_space<vmem>>) attributes {dimension_semantics = [], scalar_prefetch = 0 : i64, scratch_operands = 0 : i64, tpu.core_type = #tpu.core_type<tc>} {
    %c0 = arith.constant 0 : index
    %c0_0 = arith.constant 0 : index
    %0 = vector.load %arg2[%c0, %c0_0] : memref<16x96xf32, #tpu.memory_space<vmem>>, vector<16x96xf32>
    %c0_1 = arith.constant 0 : index
    %c0_2 = arith.constant 0 : index
    %1 = vector.load %arg4[%c0_1, %c0_2] : memref<1x96xf32, #tpu.memory_space<vmem>>, vector<1x96xf32>
    %c0_3 = arith.constant 0 : index
    %c0_4 = arith.constant 0 : index
    %2 = vector.load %arg3[%c0_3, %c0_4] : memref<32x96xf32, #tpu.memory_space<vmem>>, vector<32x96xf32>
    %c0_5 = arith.constant 0 : index
    %c0_6 = arith.constant 0 : index
    %3 = vector.load %arg5[%c0_5, %c0_6] : memref<1x96xf32, #tpu.memory_space<vmem>>, vector<1x96xf32>
    %c0_7 = arith.constant 0 : index
    %c0_8 = arith.constant 0 : index
    %c0_9 = arith.constant 0 : index
    %4 = vector.load %arg0[%c0_7, %c0_8, %c0_9] : memref<8x2x16xf32, #tpu.memory_space<vmem>>, vector<1x2x16xf32>
    %5 = vector.shape_cast %4 : vector<1x2x16xf32> to vector<2x16xf32>
    %cst = arith.constant dense<0.000000e+00> : vector<2x96xf32>
    %6 = tpu.matmul %5, %0, %cst {dimension_numbers = #tpu.dot_dimension_numbers<[1], [0], [0], [1], [0, 0, 1, 1], [], []>} : vector<2x16xf32>, vector<16x96xf32>, vector<2x96xf32> -> vector<2x96xf32>
    %7 = vector.broadcast %1 : vector<1x96xf32> to vector<2x96xf32>
    %8 = arith.addf %6, %7 : vector<2x96xf32>
    %c1 = arith.constant 1 : index
    %c0_10 = arith.constant 0 : index
    %c0_11 = arith.constant 0 : index
    %9 = vector.load %arg0[%c1, %c0_10, %c0_11] : memref<8x2x16xf32, #tpu.memory_space<vmem>>, vector<1x2x16xf32>
    %10 = vector.shape_cast %9 : vector<1x2x16xf32> to vector<2x16xf32>
    %cst_12 = arith.constant dense<0.000000e+00> : vector<2x96xf32>
    %11 = tpu.matmul %10, %0, %cst_12 {dimension_numbers = #tpu.dot_dimension_numbers<[1], [0], [0], [1], [0, 0, 1, 1], [], []>} : vector<2x16xf32>, vector<16x96xf32>, vector<2x96xf32> -> vector<2x96xf32>
    %12 = vector.broadcast %1 : vector<1x96xf32> to vector<2x96xf32>
    %13 = arith.addf %11, %12 : vector<2x96xf32>
    %c2 = arith.constant 2 : index
    %c0_13 = arith.constant 0 : index
    %c0_14 = arith.constant 0 : index
    %14 = vector.load %arg0[%c2, %c0_13, %c0_14] : memref<8x2x16xf32, #tpu.memory_space<vmem>>, vector<1x2x16xf32>
    %15 = vector.shape_cast %14 : vector<1x2x16xf32> to vector<2x16xf32>
    %cst_15 = arith.constant dense<0.000000e+00> : vector<2x96xf32>
    %16 = tpu.matmul %15, %0, %cst_15 {dimension_numbers = #tpu.dot_dimension_numbers<[1], [0], [0], [1], [0, 0, 1, 1], [], []>} : vector<2x16xf32>, vector<16x96xf32>, vector<2x96xf32> -> vector<2x96xf32>
    %17 = vector.broadcast %1 : vector<1x96xf32> to vector<2x96xf32>
    %18 = arith.addf %16, %17 : vector<2x96xf32>
    %c3 = arith.constant 3 : index
    %c0_16 = arith.constant 0 : index
    %c0_17 = arith.constant 0 : index
    %19 = vector.load %arg0[%c3, %c0_16, %c0_17] : memref<8x2x16xf32, #tpu.memory_space<vmem>>, vector<1x2x16xf32>
    %20 = vector.shape_cast %19 : vector<1x2x16xf32> to vector<2x16xf32>
    %cst_18 = arith.constant dense<0.000000e+00> : vector<2x96xf32>
    %21 = tpu.matmul %20, %0, %cst_18 {dimension_numbers = #tpu.dot_dimension_numbers<[1], [0], [0], [1], [0, 0, 1, 1], [], []>} : vector<2x16xf32>, vector<16x96xf32>, vector<2x96xf32> -> vector<2x96xf32>
    %22 = vector.broadcast %1 : vector<1x96xf32> to vector<2x96xf32>
    %23 = arith.addf %21, %22 : vector<2x96xf32>
    %c4 = arith.constant 4 : index
    %c0_19 = arith.constant 0 : index
    %c0_20 = arith.constant 0 : index
    %24 = vector.load %arg0[%c4, %c0_19, %c0_20] : memref<8x2x16xf32, #tpu.memory_space<vmem>>, vector<1x2x16xf32>
    %25 = vector.shape_cast %24 : vector<1x2x16xf32> to vector<2x16xf32>
    %cst_21 = arith.constant dense<0.000000e+00> : vector<2x96xf32>
    %26 = tpu.matmul %25, %0, %cst_21 {dimension_numbers = #tpu.dot_dimension_numbers<[1], [0], [0], [1], [0, 0, 1, 1], [], []>} : vector<2x16xf32>, vector<16x96xf32>, vector<2x96xf32> -> vector<2x96xf32>
    %27 = vector.broadcast %1 : vector<1x96xf32> to vector<2x96xf32>
    %28 = arith.addf %26, %27 : vector<2x96xf32>
    %c5 = arith.constant 5 : index
    %c0_22 = arith.constant 0 : index
    %c0_23 = arith.constant 0 : index
    %29 = vector.load %arg0[%c5, %c0_22, %c0_23] : memref<8x2x16xf32, #tpu.memory_space<vmem>>, vector<1x2x16xf32>
    %30 = vector.shape_cast %29 : vector<1x2x16xf32> to vector<2x16xf32>
    %cst_24 = arith.constant dense<0.000000e+00> : vector<2x96xf32>
    %31 = tpu.matmul %30, %0, %cst_24 {dimension_numbers = #tpu.dot_dimension_numbers<[1], [0], [0], [1], [0, 0, 1, 1], [], []>} : vector<2x16xf32>, vector<16x96xf32>, vector<2x96xf32> -> vector<2x96xf32>
    %32 = vector.broadcast %1 : vector<1x96xf32> to vector<2x96xf32>
    %33 = arith.addf %31, %32 : vector<2x96xf32>
    %c6 = arith.constant 6 : index
    %c0_25 = arith.constant 0 : index
    %c0_26 = arith.constant 0 : index
    %34 = vector.load %arg0[%c6, %c0_25, %c0_26] : memref<8x2x16xf32, #tpu.memory_space<vmem>>, vector<1x2x16xf32>
    %35 = vector.shape_cast %34 : vector<1x2x16xf32> to vector<2x16xf32>
    %cst_27 = arith.constant dense<0.000000e+00> : vector<2x96xf32>
    %36 = tpu.matmul %35, %0, %cst_27 {dimension_numbers = #tpu.dot_dimension_numbers<[1], [0], [0], [1], [0, 0, 1, 1], [], []>} : vector<2x16xf32>, vector<16x96xf32>, vector<2x96xf32> -> vector<2x96xf32>
    %37 = vector.broadcast %1 : vector<1x96xf32> to vector<2x96xf32>
    %38 = arith.addf %36, %37 : vector<2x96xf32>
    %c7 = arith.constant 7 : index
    %c0_28 = arith.constant 0 : index
    %c0_29 = arith.constant 0 : index
    %39 = vector.load %arg0[%c7, %c0_28, %c0_29] : memref<8x2x16xf32, #tpu.memory_space<vmem>>, vector<1x2x16xf32>
    %40 = vector.shape_cast %39 : vector<1x2x16xf32> to vector<2x16xf32>
    %cst_30 = arith.constant dense<0.000000e+00> : vector<2x96xf32>
    %41 = tpu.matmul %40, %0, %cst_30 {dimension_numbers = #tpu.dot_dimension_numbers<[1], [0], [0], [1], [0, 0, 1, 1], [], []>} : vector<2x16xf32>, vector<16x96xf32>, vector<2x96xf32> -> vector<2x96xf32>
    %42 = vector.broadcast %1 : vector<1x96xf32> to vector<2x96xf32>
    %43 = arith.addf %41, %42 : vector<2x96xf32>
    %c0_31 = arith.constant 0 : index
    %c0_32 = arith.constant 0 : index
    %44 = vector.load %arg1[%c0_31, %c0_32] : memref<2x32xf32, #tpu.memory_space<vmem>>, vector<2x32xf32>
    %cst_33 = arith.constant dense<0.000000e+00> : vector<2x96xf32>
    %45 = tpu.matmul %44, %2, %cst_33 {dimension_numbers = #tpu.dot_dimension_numbers<[1], [0], [0], [1], [0, 0, 1, 1], [], []>} : vector<2x32xf32>, vector<32x96xf32>, vector<2x96xf32> -> vector<2x96xf32>
    %46 = vector.broadcast %3 : vector<1x96xf32> to vector<2x96xf32>
    %47 = arith.addf %45, %46 : vector<2x96xf32>
    %48 = vector.extract_strided_slice %8 {offsets = [0, 0], sizes = [2, 32], strides = [1, 1]} : vector<2x96xf32> to vector<2x32xf32>
    %49 = vector.extract_strided_slice %47 {offsets = [0, 0], sizes = [2, 32], strides = [1, 1]} : vector<2x96xf32> to vector<2x32xf32>
    %50 = arith.addf %48, %49 : vector<2x32xf32>
    %51 = arith.negf %50 : vector<2x32xf32>
    %52 = math.exp %51 : vector<2x32xf32>
    %cst_34 = arith.constant 1.000000e+00 : f32
    %53 = vector.broadcast %cst_34 : f32 to vector<2x32xf32>
    %54 = arith.addf %53, %52 : vector<2x32xf32>
    %55 = arith.divf %53, %54 : vector<2x32xf32>
    %56 = vector.extract_strided_slice %8 {offsets = [0, 32], sizes = [2, 32], strides = [1, 1]} : vector<2x96xf32> to vector<2x32xf32>
    %57 = vector.extract_strided_slice %47 {offsets = [0, 32], sizes = [2, 32], strides = [1, 1]} : vector<2x96xf32> to vector<2x32xf32>
    %58 = arith.addf %56, %57 : vector<2x32xf32>
    %59 = arith.negf %58 : vector<2x32xf32>
    %60 = math.exp %59 : vector<2x32xf32>
    %cst_35 = arith.constant 1.000000e+00 : f32
    %61 = vector.broadcast %cst_35 : f32 to vector<2x32xf32>
    %62 = arith.addf %61, %60 : vector<2x32xf32>
    %63 = arith.divf %61, %62 : vector<2x32xf32>
    %64 = vector.extract_strided_slice %8 {offsets = [0, 64], sizes = [2, 32], strides = [1, 1]} : vector<2x96xf32> to vector<2x32xf32>
    %65 = vector.extract_strided_slice %47 {offsets = [0, 64], sizes = [2, 32], strides = [1, 1]} : vector<2x96xf32> to vector<2x32xf32>
    %66 = arith.mulf %55, %65 : vector<2x32xf32>
    %67 = arith.addf %64, %66 : vector<2x32xf32>
    %68 = math.tanh %67 : vector<2x32xf32>
    %cst_36 = arith.constant 1.000000e+00 : f32
    %69 = vector.broadcast %cst_36 : f32 to vector<2x32xf32>
    %70 = arith.subf %69, %63 : vector<2x32xf32>
    %71 = arith.mulf %70, %68 : vector<2x32xf32>
    %72 = arith.mulf %63, %44 : vector<2x32xf32>
    %73 = arith.addf %71, %72 : vector<2x32xf32>
    %cst_37 = arith.constant dense<0.000000e+00> : vector<2x96xf32>
    %74 = tpu.matmul %73, %2, %cst_37 {dimension_numbers = #tpu.dot_dimension_numbers<[1], [0], [0], [1], [0, 0, 1, 1], [], []>} : vector<2x32xf32>, vector<32x96xf32>, vector<2x96xf32> -> vector<2x96xf32>
    %75 = vector.broadcast %3 : vector<1x96xf32> to vector<2x96xf32>
    %76 = arith.addf %74, %75 : vector<2x96xf32>
    %77 = vector.extract_strided_slice %13 {offsets = [0, 0], sizes = [2, 32], strides = [1, 1]} : vector<2x96xf32> to vector<2x32xf32>
    %78 = vector.extract_strided_slice %76 {offsets = [0, 0], sizes = [2, 32], strides = [1, 1]} : vector<2x96xf32> to vector<2x32xf32>
    %79 = arith.addf %77, %78 : vector<2x32xf32>
    %80 = arith.negf %79 : vector<2x32xf32>
    %81 = math.exp %80 : vector<2x32xf32>
    %cst_38 = arith.constant 1.000000e+00 : f32
    %82 = vector.broadcast %cst_38 : f32 to vector<2x32xf32>
    %83 = arith.addf %82, %81 : vector<2x32xf32>
    %84 = arith.divf %82, %83 : vector<2x32xf32>
    %85 = vector.extract_strided_slice %13 {offsets = [0, 32], sizes = [2, 32], strides = [1, 1]} : vector<2x96xf32> to vector<2x32xf32>
    %86 = vector.extract_strided_slice %76 {offsets = [0, 32], sizes = [2, 32], strides = [1, 1]} : vector<2x96xf32> to vector<2x32xf32>
    %87 = arith.addf %85, %86 : vector<2x32xf32>
    %88 = arith.negf %87 : vector<2x32xf32>
    %89 = math.exp %88 : vector<2x32xf32>
    %cst_39 = arith.constant 1.000000e+00 : f32
    %90 = vector.broadcast %cst_39 : f32 to vector<2x32xf32>
    %91 = arith.addf %90, %89 : vector<2x32xf32>
    %92 = arith.divf %90, %91 : vector<2x32xf32>
    %93 = vector.extract_strided_slice %13 {offsets = [0, 64], sizes = [2, 32], strides = [1, 1]} : vector<2x96xf32> to vector<2x32xf32>
    %94 = vector.extract_strided_slice %76 {offsets = [0, 64], sizes = [2, 32], strides = [1, 1]} : vector<2x96xf32> to vector<2x32xf32>
    %95 = arith.mulf %84, %94 : vector<2x32xf32>
    %96 = arith.addf %93, %95 : vector<2x32xf32>
    %97 = math.tanh %96 : vector<2x32xf32>
    %cst_40 = arith.constant 1.000000e+00 : f32
    %98 = vector.broadcast %cst_40 : f32 to vector<2x32xf32>
    %99 = arith.subf %98, %92 : vector<2x32xf32>
    %100 = arith.mulf %99, %97 : vector<2x32xf32>
    %101 = arith.mulf %92, %73 : vector<2x32xf32>
    %102 = arith.addf %100, %101 : vector<2x32xf32>
    %cst_41 = arith.constant dense<0.000000e+00> : vector<2x96xf32>
    %103 = tpu.matmul %102, %2, %cst_41 {dimension_numbers = #tpu.dot_dimension_numbers<[1], [0], [0], [1], [0, 0, 1, 1], [], []>} : vector<2x32xf32>, vector<32x96xf32>, vector<2x96xf32> -> vector<2x96xf32>
    %104 = vector.broadcast %3 : vector<1x96xf32> to vector<2x96xf32>
    %105 = arith.addf %103, %104 : vector<2x96xf32>
    %106 = vector.extract_strided_slice %18 {offsets = [0, 0], sizes = [2, 32], strides = [1, 1]} : vector<2x96xf32> to vector<2x32xf32>
    %107 = vector.extract_strided_slice %105 {offsets = [0, 0], sizes = [2, 32], strides = [1, 1]} : vector<2x96xf32> to vector<2x32xf32>
    %108 = arith.addf %106, %107 : vector<2x32xf32>
    %109 = arith.negf %108 : vector<2x32xf32>
    %110 = math.exp %109 : vector<2x32xf32>
    %cst_42 = arith.constant 1.000000e+00 : f32
    %111 = vector.broadcast %cst_42 : f32 to vector<2x32xf32>
    %112 = arith.addf %111, %110 : vector<2x32xf32>
    %113 = arith.divf %111, %112 : vector<2x32xf32>
    %114 = vector.extract_strided_slice %18 {offsets = [0, 32], sizes = [2, 32], strides = [1, 1]} : vector<2x96xf32> to vector<2x32xf32>
    %115 = vector.extract_strided_slice %105 {offsets = [0, 32], sizes = [2, 32], strides = [1, 1]} : vector<2x96xf32> to vector<2x32xf32>
    %116 = arith.addf %114, %115 : vector<2x32xf32>
    %117 = arith.negf %116 : vector<2x32xf32>
    %118 = math.exp %117 : vector<2x32xf32>
    %cst_43 = arith.constant 1.000000e+00 : f32
    %119 = vector.broadcast %cst_43 : f32 to vector<2x32xf32>
    %120 = arith.addf %119, %118 : vector<2x32xf32>
    %121 = arith.divf %119, %120 : vector<2x32xf32>
    %122 = vector.extract_strided_slice %18 {offsets = [0, 64], sizes = [2, 32], strides = [1, 1]} : vector<2x96xf32> to vector<2x32xf32>
    %123 = vector.extract_strided_slice %105 {offsets = [0, 64], sizes = [2, 32], strides = [1, 1]} : vector<2x96xf32> to vector<2x32xf32>
    %124 = arith.mulf %113, %123 : vector<2x32xf32>
    %125 = arith.addf %122, %124 : vector<2x32xf32>
    %126 = math.tanh %125 : vector<2x32xf32>
    %cst_44 = arith.constant 1.000000e+00 : f32
    %127 = vector.broadcast %cst_44 : f32 to vector<2x32xf32>
    %128 = arith.subf %127, %121 : vector<2x32xf32>
    %129 = arith.mulf %128, %126 : vector<2x32xf32>
    %130 = arith.mulf %121, %102 : vector<2x32xf32>
    %131 = arith.addf %129, %130 : vector<2x32xf32>
    %cst_45 = arith.constant dense<0.000000e+00> : vector<2x96xf32>
    %132 = tpu.matmul %131, %2, %cst_45 {dimension_numbers = #tpu.dot_dimension_numbers<[1], [0], [0], [1], [0, 0, 1, 1], [], []>} : vector<2x32xf32>, vector<32x96xf32>, vector<2x96xf32> -> vector<2x96xf32>
    %133 = vector.broadcast %3 : vector<1x96xf32> to vector<2x96xf32>
    %134 = arith.addf %132, %133 : vector<2x96xf32>
    %135 = vector.extract_strided_slice %23 {offsets = [0, 0], sizes = [2, 32], strides = [1, 1]} : vector<2x96xf32> to vector<2x32xf32>
    %136 = vector.extract_strided_slice %134 {offsets = [0, 0], sizes = [2, 32], strides = [1, 1]} : vector<2x96xf32> to vector<2x32xf32>
    %137 = arith.addf %135, %136 : vector<2x32xf32>
    %138 = arith.negf %137 : vector<2x32xf32>
    %139 = math.exp %138 : vector<2x32xf32>
    %cst_46 = arith.constant 1.000000e+00 : f32
    %140 = vector.broadcast %cst_46 : f32 to vector<2x32xf32>
    %141 = arith.addf %140, %139 : vector<2x32xf32>
    %142 = arith.divf %140, %141 : vector<2x32xf32>
    %143 = vector.extract_strided_slice %23 {offsets = [0, 32], sizes = [2, 32], strides = [1, 1]} : vector<2x96xf32> to vector<2x32xf32>
    %144 = vector.extract_strided_slice %134 {offsets = [0, 32], sizes = [2, 32], strides = [1, 1]} : vector<2x96xf32> to vector<2x32xf32>
    %145 = arith.addf %143, %144 : vector<2x32xf32>
    %146 = arith.negf %145 : vector<2x32xf32>
    %147 = math.exp %146 : vector<2x32xf32>
    %cst_47 = arith.constant 1.000000e+00 : f32
    %148 = vector.broadcast %cst_47 : f32 to vector<2x32xf32>
    %149 = arith.addf %148, %147 : vector<2x32xf32>
    %150 = arith.divf %148, %149 : vector<2x32xf32>
    %151 = vector.extract_strided_slice %23 {offsets = [0, 64], sizes = [2, 32], strides = [1, 1]} : vector<2x96xf32> to vector<2x32xf32>
    %152 = vector.extract_strided_slice %134 {offsets = [0, 64], sizes = [2, 32], strides = [1, 1]} : vector<2x96xf32> to vector<2x32xf32>
    %153 = arith.mulf %142, %152 : vector<2x32xf32>
    %154 = arith.addf %151, %153 : vector<2x32xf32>
    %155 = math.tanh %154 : vector<2x32xf32>
    %cst_48 = arith.constant 1.000000e+00 : f32
    %156 = vector.broadcast %cst_48 : f32 to vector<2x32xf32>
    %157 = arith.subf %156, %150 : vector<2x32xf32>
    %158 = arith.mulf %157, %155 : vector<2x32xf32>
    %159 = arith.mulf %150, %131 : vector<2x32xf32>
    %160 = arith.addf %158, %159 : vector<2x32xf32>
    %cst_49 = arith.constant dense<0.000000e+00> : vector<2x96xf32>
    %161 = tpu.matmul %160, %2, %cst_49 {dimension_numbers = #tpu.dot_dimension_numbers<[1], [0], [0], [1], [0, 0, 1, 1], [], []>} : vector<2x32xf32>, vector<32x96xf32>, vector<2x96xf32> -> vector<2x96xf32>
    %162 = vector.broadcast %3 : vector<1x96xf32> to vector<2x96xf32>
    %163 = arith.addf %161, %162 : vector<2x96xf32>
    %164 = vector.extract_strided_slice %28 {offsets = [0, 0], sizes = [2, 32], strides = [1, 1]} : vector<2x96xf32> to vector<2x32xf32>
    %165 = vector.extract_strided_slice %163 {offsets = [0, 0], sizes = [2, 32], strides = [1, 1]} : vector<2x96xf32> to vector<2x32xf32>
    %166 = arith.addf %164, %165 : vector<2x32xf32>
    %167 = arith.negf %166 : vector<2x32xf32>
    %168 = math.exp %167 : vector<2x32xf32>
    %cst_50 = arith.constant 1.000000e+00 : f32
    %169 = vector.broadcast %cst_50 : f32 to vector<2x32xf32>
    %170 = arith.addf %169, %168 : vector<2x32xf32>
    %171 = arith.divf %169, %170 : vector<2x32xf32>
    %172 = vector.extract_strided_slice %28 {offsets = [0, 32], sizes = [2, 32], strides = [1, 1]} : vector<2x96xf32> to vector<2x32xf32>
    %173 = vector.extract_strided_slice %163 {offsets = [0, 32], sizes = [2, 32], strides = [1, 1]} : vector<2x96xf32> to vector<2x32xf32>
    %174 = arith.addf %172, %173 : vector<2x32xf32>
    %175 = arith.negf %174 : vector<2x32xf32>
    %176 = math.exp %175 : vector<2x32xf32>
    %cst_51 = arith.constant 1.000000e+00 : f32
    %177 = vector.broadcast %cst_51 : f32 to vector<2x32xf32>
    %178 = arith.addf %177, %176 : vector<2x32xf32>
    %179 = arith.divf %177, %178 : vector<2x32xf32>
    %180 = vector.extract_strided_slice %28 {offsets = [0, 64], sizes = [2, 32], strides = [1, 1]} : vector<2x96xf32> to vector<2x32xf32>
    %181 = vector.extract_strided_slice %163 {offsets = [0, 64], sizes = [2, 32], strides = [1, 1]} : vector<2x96xf32> to vector<2x32xf32>
    %182 = arith.mulf %171, %181 : vector<2x32xf32>
    %183 = arith.addf %180, %182 : vector<2x32xf32>
    %184 = math.tanh %183 : vector<2x32xf32>
    %cst_52 = arith.constant 1.000000e+00 : f32
    %185 = vector.broadcast %cst_52 : f32 to vector<2x32xf32>
    %186 = arith.subf %185, %179 : vector<2x32xf32>
    %187 = arith.mulf %186, %184 : vector<2x32xf32>
    %188 = arith.mulf %179, %160 : vector<2x32xf32>
    %189 = arith.addf %187, %188 : vector<2x32xf32>
    %cst_53 = arith.constant dense<0.000000e+00> : vector<2x96xf32>
    %190 = tpu.matmul %189, %2, %cst_53 {dimension_numbers = #tpu.dot_dimension_numbers<[1], [0], [0], [1], [0, 0, 1, 1], [], []>} : vector<2x32xf32>, vector<32x96xf32>, vector<2x96xf32> -> vector<2x96xf32>
    %191 = vector.broadcast %3 : vector<1x96xf32> to vector<2x96xf32>
    %192 = arith.addf %190, %191 : vector<2x96xf32>
    %193 = vector.extract_strided_slice %33 {offsets = [0, 0], sizes = [2, 32], strides = [1, 1]} : vector<2x96xf32> to vector<2x32xf32>
    %194 = vector.extract_strided_slice %192 {offsets = [0, 0], sizes = [2, 32], strides = [1, 1]} : vector<2x96xf32> to vector<2x32xf32>
    %195 = arith.addf %193, %194 : vector<2x32xf32>
    %196 = arith.negf %195 : vector<2x32xf32>
    %197 = math.exp %196 : vector<2x32xf32>
    %cst_54 = arith.constant 1.000000e+00 : f32
    %198 = vector.broadcast %cst_54 : f32 to vector<2x32xf32>
    %199 = arith.addf %198, %197 : vector<2x32xf32>
    %200 = arith.divf %198, %199 : vector<2x32xf32>
    %201 = vector.extract_strided_slice %33 {offsets = [0, 32], sizes = [2, 32], strides = [1, 1]} : vector<2x96xf32> to vector<2x32xf32>
    %202 = vector.extract_strided_slice %192 {offsets = [0, 32], sizes = [2, 32], strides = [1, 1]} : vector<2x96xf32> to vector<2x32xf32>
    %203 = arith.addf %201, %202 : vector<2x32xf32>
    %204 = arith.negf %203 : vector<2x32xf32>
    %205 = math.exp %204 : vector<2x32xf32>
    %cst_55 = arith.constant 1.000000e+00 : f32
    %206 = vector.broadcast %cst_55 : f32 to vector<2x32xf32>
    %207 = arith.addf %206, %205 : vector<2x32xf32>
    %208 = arith.divf %206, %207 : vector<2x32xf32>
    %209 = vector.extract_strided_slice %33 {offsets = [0, 64], sizes = [2, 32], strides = [1, 1]} : vector<2x96xf32> to vector<2x32xf32>
    %210 = vector.extract_strided_slice %192 {offsets = [0, 64], sizes = [2, 32], strides = [1, 1]} : vector<2x96xf32> to vector<2x32xf32>
    %211 = arith.mulf %200, %210 : vector<2x32xf32>
    %212 = arith.addf %209, %211 : vector<2x32xf32>
    %213 = math.tanh %212 : vector<2x32xf32>
    %cst_56 = arith.constant 1.000000e+00 : f32
    %214 = vector.broadcast %cst_56 : f32 to vector<2x32xf32>
    %215 = arith.subf %214, %208 : vector<2x32xf32>
    %216 = arith.mulf %215, %213 : vector<2x32xf32>
    %217 = arith.mulf %208, %189 : vector<2x32xf32>
    %218 = arith.addf %216, %217 : vector<2x32xf32>
    %cst_57 = arith.constant dense<0.000000e+00> : vector<2x96xf32>
    %219 = tpu.matmul %218, %2, %cst_57 {dimension_numbers = #tpu.dot_dimension_numbers<[1], [0], [0], [1], [0, 0, 1, 1], [], []>} : vector<2x32xf32>, vector<32x96xf32>, vector<2x96xf32> -> vector<2x96xf32>
    %220 = vector.broadcast %3 : vector<1x96xf32> to vector<2x96xf32>
    %221 = arith.addf %219, %220 : vector<2x96xf32>
    %222 = vector.extract_strided_slice %38 {offsets = [0, 0], sizes = [2, 32], strides = [1, 1]} : vector<2x96xf32> to vector<2x32xf32>
    %223 = vector.extract_strided_slice %221 {offsets = [0, 0], sizes = [2, 32], strides = [1, 1]} : vector<2x96xf32> to vector<2x32xf32>
    %224 = arith.addf %222, %223 : vector<2x32xf32>
    %225 = arith.negf %224 : vector<2x32xf32>
    %226 = math.exp %225 : vector<2x32xf32>
    %cst_58 = arith.constant 1.000000e+00 : f32
    %227 = vector.broadcast %cst_58 : f32 to vector<2x32xf32>
    %228 = arith.addf %227, %226 : vector<2x32xf32>
    %229 = arith.divf %227, %228 : vector<2x32xf32>
    %230 = vector.extract_strided_slice %38 {offsets = [0, 32], sizes = [2, 32], strides = [1, 1]} : vector<2x96xf32> to vector<2x32xf32>
    %231 = vector.extract_strided_slice %221 {offsets = [0, 32], sizes = [2, 32], strides = [1, 1]} : vector<2x96xf32> to vector<2x32xf32>
    %232 = arith.addf %230, %231 : vector<2x32xf32>
    %233 = arith.negf %232 : vector<2x32xf32>
    %234 = math.exp %233 : vector<2x32xf32>
    %cst_59 = arith.constant 1.000000e+00 : f32
    %235 = vector.broadcast %cst_59 : f32 to vector<2x32xf32>
    %236 = arith.addf %235, %234 : vector<2x32xf32>
    %237 = arith.divf %235, %236 : vector<2x32xf32>
    %238 = vector.extract_strided_slice %38 {offsets = [0, 64], sizes = [2, 32], strides = [1, 1]} : vector<2x96xf32> to vector<2x32xf32>
    %239 = vector.extract_strided_slice %221 {offsets = [0, 64], sizes = [2, 32], strides = [1, 1]} : vector<2x96xf32> to vector<2x32xf32>
    %240 = arith.mulf %229, %239 : vector<2x32xf32>
    %241 = arith.addf %238, %240 : vector<2x32xf32>
    %242 = math.tanh %241 : vector<2x32xf32>
    %cst_60 = arith.constant 1.000000e+00 : f32
    %243 = vector.broadcast %cst_60 : f32 to vector<2x32xf32>
    %244 = arith.subf %243, %237 : vector<2x32xf32>
    %245 = arith.mulf %244, %242 : vector<2x32xf32>
    %246 = arith.mulf %237, %218 : vector<2x32xf32>
    %247 = arith.addf %245, %246 : vector<2x32xf32>
    %cst_61 = arith.constant dense<0.000000e+00> : vector<2x96xf32>
    %248 = tpu.matmul %247, %2, %cst_61 {dimension_numbers = #tpu.dot_dimension_numbers<[1], [0], [0], [1], [0, 0, 1, 1], [], []>} : vector<2x32xf32>, vector<32x96xf32>, vector<2x96xf32> -> vector<2x96xf32>
    %249 = vector.broadcast %3 : vector<1x96xf32> to vector<2x96xf32>
    %250 = arith.addf %248, %249 : vector<2x96xf32>
    %251 = vector.extract_strided_slice %43 {offsets = [0, 0], sizes = [2, 32], strides = [1, 1]} : vector<2x96xf32> to vector<2x32xf32>
    %252 = vector.extract_strided_slice %250 {offsets = [0, 0], sizes = [2, 32], strides = [1, 1]} : vector<2x96xf32> to vector<2x32xf32>
    %253 = arith.addf %251, %252 : vector<2x32xf32>
    %254 = arith.negf %253 : vector<2x32xf32>
    %255 = math.exp %254 : vector<2x32xf32>
    %cst_62 = arith.constant 1.000000e+00 : f32
    %256 = vector.broadcast %cst_62 : f32 to vector<2x32xf32>
    %257 = arith.addf %256, %255 : vector<2x32xf32>
    %258 = arith.divf %256, %257 : vector<2x32xf32>
    %259 = vector.extract_strided_slice %43 {offsets = [0, 32], sizes = [2, 32], strides = [1, 1]} : vector<2x96xf32> to vector<2x32xf32>
    %260 = vector.extract_strided_slice %250 {offsets = [0, 32], sizes = [2, 32], strides = [1, 1]} : vector<2x96xf32> to vector<2x32xf32>
    %261 = arith.addf %259, %260 : vector<2x32xf32>
    %262 = arith.negf %261 : vector<2x32xf32>
    %263 = math.exp %262 : vector<2x32xf32>
    %cst_63 = arith.constant 1.000000e+00 : f32
    %264 = vector.broadcast %cst_63 : f32 to vector<2x32xf32>
    %265 = arith.addf %264, %263 : vector<2x32xf32>
    %266 = arith.divf %264, %265 : vector<2x32xf32>
    %267 = vector.extract_strided_slice %43 {offsets = [0, 64], sizes = [2, 32], strides = [1, 1]} : vector<2x96xf32> to vector<2x32xf32>
    %268 = vector.extract_strided_slice %250 {offsets = [0, 64], sizes = [2, 32], strides = [1, 1]} : vector<2x96xf32> to vector<2x32xf32>
    %269 = arith.mulf %258, %268 : vector<2x32xf32>
    %270 = arith.addf %267, %269 : vector<2x32xf32>
    %271 = math.tanh %270 : vector<2x32xf32>
    %cst_64 = arith.constant 1.000000e+00 : f32
    %272 = vector.broadcast %cst_64 : f32 to vector<2x32xf32>
    %273 = arith.subf %272, %266 : vector<2x32xf32>
    %274 = arith.mulf %273, %271 : vector<2x32xf32>
    %275 = arith.mulf %266, %247 : vector<2x32xf32>
    %276 = arith.addf %274, %275 : vector<2x32xf32>
    %277 = tpu.concatenate %73, %102, %131, %160, %189, %218, %247, %276 in 1 : vector<2x32xf32>, vector<2x32xf32>, vector<2x32xf32>, vector<2x32xf32>, vector<2x32xf32>, vector<2x32xf32>, vector<2x32xf32>, vector<2x32xf32> -> vector<2x256xf32>
    %c0_65 = arith.constant 0 : index
    %c0_66 = arith.constant 0 : index
    %278 = vector.load %arg6[%c0_65, %c0_66] : memref<256x32xf32, #tpu.memory_space<vmem>>, vector<256x32xf32>
    %cst_67 = arith.constant dense<0.000000e+00> : vector<2x32xf32>
    %279 = tpu.matmul %277, %278, %cst_67 {dimension_numbers = #tpu.dot_dimension_numbers<[1], [0], [0], [1], [0, 0, 1, 1], [], []>} : vector<2x256xf32>, vector<256x32xf32>, vector<2x32xf32> -> vector<2x32xf32>
    %c0_68 = arith.constant 0 : index
    %c0_69 = arith.constant 0 : index
    %280 = vector.load %arg7[%c0_68, %c0_69] : memref<1x32xf32, #tpu.memory_space<vmem>>, vector<1x32xf32>
    %281 = vector.broadcast %280 : vector<1x32xf32> to vector<2x32xf32>
    %282 = arith.addf %279, %281 : vector<2x32xf32>
    %cst_70 = arith.constant 0.000000e+00 : f32
    %283 = vector.broadcast %cst_70 : f32 to vector<2x32xf32>
    %284 = arith.maximumf %282, %283 : vector<2x32xf32>
    %c0_71 = arith.constant 0 : index
    %c0_72 = arith.constant 0 : index
    %285 = vector.load %arg8[%c0_71, %c0_72] : memref<32x10xf32, #tpu.memory_space<vmem>>, vector<32x10xf32>
    %cst_73 = arith.constant dense<0.000000e+00> : vector<2x10xf32>
    %286 = tpu.matmul %284, %285, %cst_73 {dimension_numbers = #tpu.dot_dimension_numbers<[1], [0], [0], [1], [0, 0, 1, 1], [], []>} : vector<2x32xf32>, vector<32x10xf32>, vector<2x10xf32> -> vector<2x10xf32>
    %c0_74 = arith.constant 0 : index
    %c0_75 = arith.constant 0 : index
    %287 = vector.load %arg9[%c0_74, %c0_75] : memref<1x10xf32, #tpu.memory_space<vmem>>, vector<1x10xf32>
    %288 = vector.broadcast %287 : vector<1x10xf32> to vector<2x10xf32>
    %289 = arith.addf %286, %288 : vector<2x10xf32>
    %cst_76 = arith.constant dense<0xFF800000> : vector<2xf32>
    %290 = vector.multi_reduction <maximumf>, %289, %cst_76 [1] : vector<2x10xf32> to vector<2xf32>
    %291 = vector.shape_cast %290 : vector<2xf32> to vector<2x1xf32>
    %292 = vector.broadcast %291 : vector<2x1xf32> to vector<2x10xf32>
    %293 = arith.subf %289, %292 : vector<2x10xf32>
    %294 = math.exp %293 : vector<2x10xf32>
    %cst_77 = arith.constant dense<0.000000e+00> : vector<2xf32>
    %295 = vector.multi_reduction <add>, %294, %cst_77 [1] : vector<2x10xf32> to vector<2xf32>
    %296 = vector.shape_cast %295 : vector<2xf32> to vector<2x1xf32>
    %297 = math.log %296 : vector<2x1xf32>
    %298 = vector.broadcast %297 : vector<2x1xf32> to vector<2x10xf32>
    %299 = arith.subf %293, %298 : vector<2x10xf32>
    %c0_78 = arith.constant 0 : index
    %c0_79 = arith.constant 0 : index
    %300 = vector.load %arg10[%c0_78, %c0_79] : memref<2x10xf32, #tpu.memory_space<vmem>>, vector<2x10xf32>
    tpu.vector_store %arg10[%c0_78, %c0_79], %299 {strides = array<i32>} : memref<2x10xf32, #tpu.memory_space<vmem>>, vector<2x10xf32>,
    return
  }
}

</mosaic_0001>

<llo_original>
// kernel: tpu_custom_call.1
$region0: #{tpu_custom_call.1}
  #allocation0 [shape = 'u32[]', space=smem, size = 0x4, offset = 0x4, fixed_abs, tag = 'smem constant byte address 0x4 - core index']
  #allocation1 [shape = 'u32[144,128]{1,0:T(1,128)}', space=vmem, size = 0x12000, scoped, tag = 'internal scratch']
  %s0 = inlined_call_operand.vmem [shape: f32[8,2,16], index: 0, kind: input, shape index: {}]
  %s1 = inlined_call_operand.vmem [shape: f32[2,32], index: 1, kind: input, shape index: {}]
  %s2 = inlined_call_operand.vmem [shape: f32[16,96], index: 2, kind: input, shape index: {}]
  %s3 = inlined_call_operand.vmem [shape: f32[32,96], index: 3, kind: input, shape index: {}]
  %s4 = inlined_call_operand.vmem [shape: f32[1,96], index: 4, kind: input, shape index: {}]
  %s5 = inlined_call_operand.vmem [shape: f32[1,96], index: 5, kind: input, shape index: {}]
  %s6 = inlined_call_operand.vmem [shape: f32[256,32], index: 6, kind: input, shape index: {}]
  %s7 = inlined_call_operand.vmem [shape: f32[1,32], index: 7, kind: input, shape index: {}]
  %s8 = inlined_call_operand.vmem [shape: f32[32,10], index: 8, kind: input, shape index: {}]
  %s9 = inlined_call_operand.vmem [shape: f32[1,10], index: 9, kind: input, shape index: {}]
  %s10 = inlined_call_operand.hbm [shape: f32[2,10], index: 10, kind: output, shape index: {}]
  %s11 = sld [smem:[#allocation0]]
  $region50: #{tpu_custom_call.1} parent=0
    _
  %s13 = ssub.s32 1, %s11
  %s14 = scalar_select 0, %s13, %s11
  $region1: #{tpu_custom_call.1} parent=0
    #allocation2 [shape = 'u8[1024]{0}', space=vmem, size = 0x400, scoped, tag = 'output window, operand 0, single buffered']
    #allocation3 [shape = 's32[1]{0}', space=sflag, size = 0x4, scoped, tag = 'scoped memory for tpu_custom_call.1']
    %15 = vsyncpa [#allocation3], 0
    // Predicated region
    $region2: #{tpu_custom_call.1} parent=1 // pred_check
      _
    $region3: #{tpu_custom_call.1} parent=1 // pred_check_branch
      %17 = sbr.rel (0) target = $region5
    $region4: #{tpu_custom_call.1} parent=1 // pred_region
      _
    $region5: #{tpu_custom_call.1} parent=1 // pred_fallthru
      _
    // Predicated region
    $region6: #{tpu_custom_call.1} parent=1 // pred_check
      _
    $region7: #{tpu_custom_call.1} parent=1 // pred_check_branch
      %19 = sbr.rel (0) target = $region9
    $region8: #{tpu_custom_call.1} parent=1 // pred_region
      _
    $region9: #{tpu_custom_call.1} parent=1 // pred_fallthru
      _
    // Predicated region
    $region10: #{tpu_custom_call.1} parent=1 // pred_check
      _
    $region11: #{tpu_custom_call.1} parent=1 // pred_check_branch
      %21 = sbr.rel (0) target = $region13
    $region12: #{tpu_custom_call.1} parent=1 // pred_region
      _
    $region13: #{tpu_custom_call.1} parent=1 // pred_fallthru
      _
    // Predicated region
    $region14: #{tpu_custom_call.1} parent=1 // pred_check
      _
    $region15: #{tpu_custom_call.1} parent=1 // pred_check_branch
      %23 = sbr.rel (0) target = $region17
    $region16: #{tpu_custom_call.1} parent=1 // pred_region
      _
    $region17: #{tpu_custom_call.1} parent=1 // pred_fallthru
      _
    // Predicated region
    $region18: #{tpu_custom_call.1} parent=1 // pred_check
      _
    $region19: #{tpu_custom_call.1} parent=1 // pred_check_branch
      %25 = sbr.rel (0) target = $region21
    $region20: #{tpu_custom_call.1} parent=1 // pred_region
      _
    $region21: #{tpu_custom_call.1} parent=1 // pred_fallthru
      _
    // Predicated region
    $region22: #{tpu_custom_call.1} parent=1 // pred_check
      _
    $region23: #{tpu_custom_call.1} parent=1 // pred_check_branch
      %27 = sbr.rel (0) target = $region25
    $region24: #{tpu_custom_call.1} parent=1 // pred_region
      _
    $region25: #{tpu_custom_call.1} parent=1 // pred_fallthru
      _
    // Predicated region
    $region26: #{tpu_custom_call.1} parent=1 // pred_check
      _
    $region27: #{tpu_custom_call.1} parent=1 // pred_check_branch
      %29 = sbr.rel (0) target = $region29
    $region28: #{tpu_custom_call.1} parent=1 // pred_region
      _
    $region29: #{tpu_custom_call.1} parent=1 // pred_fallthru
      _
    // Predicated region
    $region30: #{tpu_custom_call.1} parent=1 // pred_check
      _
    $region31: #{tpu_custom_call.1} parent=1 // pred_check_branch
      %31 = sbr.rel (0) target = $region33
    $region32: #{tpu_custom_call.1} parent=1 // pred_region
      _
    $region33: #{tpu_custom_call.1} parent=1 // pred_fallthru
      _
    // Predicated region
    $region34: #{tpu_custom_call.1} parent=1 // pred_check
      _
    $region35: #{tpu_custom_call.1} parent=1 // pred_check_branch
      %33 = sbr.rel (0) target = $region37
    $region36: #{tpu_custom_call.1} parent=1 // pred_region
      _
    $region37: #{tpu_custom_call.1} parent=1 // pred_fallthru
      _
    // Predicated region
    $region38: #{tpu_custom_call.1} parent=1 // pred_check
      _
    $region39: #{tpu_custom_call.1} parent=1 // pred_check_branch
      %35 = sbr.rel (0) target = $region41
    $region40: #{tpu_custom_call.1} parent=1 // pred_region
      _
    $region41: #{tpu_custom_call.1} parent=1 // pred_fallthru
      _
    %v36 = vld [vmem:[%s2] sm:$0xff]
    %v37 = vld [vmem:[%s2 + $0x8] sm:$0xff]
    %v38 = vld [vmem:[%s4] sm:$0x1]
    %v39 = vld [vmem:[%s3] sm:$0xff]
    %v40 = vld [vmem:[%s3 + $0x8] sm:$0xff]
    %v41 = vld [vmem:[%s3 + $0x10] sm:$0xff]
    %v42 = vld [vmem:[%s3 + $0x18] sm:$0xff]
    %v43 = vld [vmem:[%s5] sm:$0x1]
    %v44 = vld [vmem:[%s0] sm:$0x3]
    %v46 = vlaneseq
    %v47 = vshrl.u32 %v46, 7
    %v48 = vsub.s32 0, %v47
    %v49 = vrot.slane %v38, %v48
    %vm51 = vcmask 130048
    %v53 = vsel %vm51, %v44, 0
    %55 = vmatprep.subr.mxu0 0.0
    %56 = vmatpush1.msra.mxu0 %v36
    %57 = vmatprep.subr.mxu0 0.0
    %58 = vmatpush1.msra.mxu0 %v37
    %59 = vmatprep.subr.mxu0 0.0
    %60 = vmatpush1.msra.mxu0 0.0
    %61 = vmatprep.subr.mxu0 0.0
    %62 = vmatpush1.msra.mxu0 0.0
    %63 = vmatprep.subr.mxu0 0.0
    %64 = vmatpush1.msra.mxu0 0.0
    %65 = vmatprep.subr.mxu0 0.0
    %66 = vmatpush1.msra.mxu0 0.0
    %67 = vmatprep.subr.mxu0 0.0
    %68 = vmatpush1.msra.mxu0 0.0
    %69 = vmatprep.subr.mxu0 0.0
    %70 = vmatpush1.msra.mxu0 0.0
    %71 = vmatprep.subr.mxu0 0.0
    %72 = vmatpush1.msra.mxu0 0.0
    %73 = vmatprep.subr.mxu0 0.0
    %74 = vmatpush1.msra.mxu0 0.0
    %75 = vmatprep.subr.mxu0 0.0
    %76 = vmatpush1.msra.mxu0 0.0
    %77 = vmatprep.subr.mxu0 0.0
    %78 = vmatpush1.msra.mxu0 0.0
    %79 = vmatprep.subr.mxu0 0.0
    %80 = vmatpush1.msra.mxu0 0.0
    %81 = vmatprep.subr.mxu0 0.0
    %82 = vmatpush1.msra.mxu0 0.0
    %83 = vmatprep.subr.mxu0 0.0
    %84 = vmatpush1.msra.mxu0 0.0
    %85 = vmatprep.subr.mxu0 0.0
    %86 = vmatpush1.msra.mxu0 0.0
    %87 = vmatprep.subr.mxu0 0.0
    %88 = vmatpush1.msra.mxu0 0.0
    %89 = vmatprep.subr.mxu0 0.0
    %90 = vmatpush1.msra.mxu0 0.0
    %91 = vmatprep.subr.mxu0 0.0
    %92 = vmatpush1.msra.mxu0 0.0
    %93 = vmatprep.subr.mxu0 0.0
    %94 = vmatpush1.msra.mxu0 0.0
    %95 = vmatprep.subr.mxu0 0.0
    %96 = vmatpush1.msra.mxu0 0.0
    %97 = vmatprep.subr.mxu0 0.0
    %98 = vmatpush1.msra.mxu0 0.0
    %99 = vmatprep.subr.mxu0 0.0
    %100 = vmatpush1.msra.mxu0 0.0
    %101 = vmatprep.subr.mxu0 0.0
    %102 = vmatpush1.msra.mxu0 0.0
    %103 = vmatprep.subr.mxu0 0.0
    %104 = vmatpush1.msra.mxu0 0.0
    %105 = vmatprep.subr.mxu0 0.0
    %106 = vmatpush1.msra.mxu0 0.0
    %107 = vmatprep.subr.mxu0 0.0
    %108 = vmatpush1.msra.mxu0 0.0
    %109 = vmatprep.subr.mxu0 0.0
    %110 = vmatpush1.msra.mxu0 0.0
    %111 = vmatprep.subr.mxu0 0.0
    %112 = vmatpush1.msra.mxu0 0.0
    %113 = vmatprep.subr.mxu0 0.0
    %114 = vmatpush1.msra.mxu0 0.0
    %115 = vmatprep.subr.mxu0 0.0
    %116 = vmatpush1.msra.mxu0 0.0
    %117 = vmatprep.subr.mxu0 0.0
    %118 = vmatpush1.msra.mxu0 0.0
    %119 = vmatprep.mubr.f32.mxu0 0.0
    %120 = vmatmul.mubr.f32.gmra.mrb[0].mxu0 %v53
    %v121 = vpop.f32.mrb[0].mxu0
    %v122 = vadd.f32 %v49, %v121
    %v123 = vpop.f32.mrb[0].mxu0
    %124 = vdwg.mxu0
    %s125 = scalar_lea.vmem %s0, 2
    %v126 = vld [vmem:[%s125] sm:$0x3]
    %v128 = vsel %vm51, %v126, 0
    %130 = vmatprep.subr.mxu0 0.0
    %131 = vmatpush1.msra.mxu0 %v36
    %132 = vmatprep.subr.mxu0 0.0
    %133 = vmatpush1.msra.mxu0 %v37
    %134 = vmatprep.subr.mxu0 0.0
    %135 = vmatpush1.msra.mxu0 0.0
    %136 = vmatprep.subr.mxu0 0.0
    %137 = vmatpush1.msra.mxu0 0.0
    %138 = vmatprep.subr.mxu0 0.0
    %139 = vmatpush1.msra.mxu0 0.0
    %140 = vmatprep.subr.mxu0 0.0
    %141 = vmatpush1.msra.mxu0 0.0
    %142 = vmatprep.subr.mxu0 0.0
    %143 = vmatpush1.msra.mxu0 0.0
    %144 = vmatprep.subr.mxu0 0.0
    %145 = vmatpush1.msra.mxu0 0.0
    %146 = vmatprep.subr.mxu0 0.0
    %147 = vmatpush1.msra.mxu0 0.0
    %148 = vmatprep.subr.mxu0 0.0
    %149 = vmatpush1.msra.mxu0 0.0
    %150 = vmatprep.subr.mxu0 0.0
    %151 = vmatpush1.msra.mxu0 0.0
    %152 = vmatprep.subr.mxu0 0.0
    %153 = vmatpush1.msra.mxu0 0.0
    %154 = vmatprep.subr.mxu0 0.0
    %155 = vmatpush1.msra.mxu0 0.0
    %156 = vmatprep.subr.mxu0 0.0
    %157 = vmatpush1.msra.mxu0 0.0
    %158 = vmatprep.subr.mxu0 0.0
    %159 = vmatpush1.msra.mxu0 0.0
    %160 = vmatprep.subr.mxu0 0.0
    %161 = vmatpush1.msra.mxu0 0.0
    %162 = vmatprep.subr.mxu0 0.0
    %163 = vmatpush1.msra.mxu0 0.0
    %164 = vmatprep.subr.mxu0 0.0
    %165 = vmatpush1.msra.mxu0 0.0
    %166 = vmatprep.subr.mxu0 0.0
    %167 = vmatpush1.msra.mxu0 0.0
    %168 = vmatprep.subr.mxu0 0.0
    %169 = vmatpush1.msra.mxu0 0.0
    %170 = vmatprep.subr.mxu0 0.0
    %171 = vmatpush1.msra.mxu0 0.0
    %172 = vmatprep.subr.mxu0 0.0
    %173 = vmatpush1.msra.mxu0 0.0
    %174 = vmatprep.subr.mxu0 0.0
    %175 = vmatpush1.msra.mxu0 0.0
    %176 = vmatprep.subr.mxu0 0.0
    %177 = vmatpush1.msra.mxu0 0.0
    %178 = vmatprep.subr.mxu0 0.0
    %179 = vmatpush1.msra.mxu0 0.0
    %180 = vmatprep.subr.mxu0 0.0
    %181 = vmatpush1.msra.mxu0 0.0
    %182 = vmatprep.subr.mxu0 0.0
    %183 = vmatpush1.msra.mxu0 0.0
    %184 = vmatprep.subr.mxu0 0.0
    %185 = vmatpush1.msra.mxu0 0.0
    %186 = vmatprep.subr.mxu0 0.0
    %187 = vmatpush1.msra.mxu0 0.0
    %188 = vmatprep.subr.mxu0 0.0
    %189 = vmatpush1.msra.mxu0 0.0
    %190 = vmatprep.subr.mxu0 0.0
    %191 = vmatpush1.msra.mxu0 0.0
    %192 = vmatprep.subr.mxu0 0.0
    %193 = vmatpush1.msra.mxu0 0.0
    %194 = vmatprep.mubr.f32.mxu0 0.0
    %195 = vmatmul.mubr.f32.gmra.mrb[0].mxu0 %v128
    %v196 = vpop.f32.mrb[0].mxu0
    %v197 = vadd.f32 %v49, %v196
    %v198 = vpop.f32.mrb[0].mxu0
    %199 = vdwg.mxu0
    %s200 = scalar_lea.vmem %s0, 4
    %v201 = vld [vmem:[%s200] sm:$0x3]
    %v203 = vsel %vm51, %v201, 0
    %205 = vmatprep.subr.mxu0 0.0
    %206 = vmatpush1.msra.mxu0 %v36
    %207 = vmatprep.subr.mxu0 0.0
    %208 = vmatpush1.msra.mxu0 %v37
    %209 = vmatprep.subr.mxu0 0.0
    %210 = vmatpush1.msra.mxu0 0.0
    %211 = vmatprep.subr.mxu0 0.0
    %212 = vmatpush1.msra.mxu0 0.0
    %213 = vmatprep.subr.mxu0 0.0
    %214 = vmatpush1.msra.mxu0 0.0
    %215 = vmatprep.subr.mxu0 0.0
    %216 = vmatpush1.msra.mxu0 0.0
    %217 = vmatprep.subr.mxu0 0.0
    %218 = vmatpush1.msra.mxu0 0.0
    %219 = vmatprep.subr.mxu0 0.0
    %220 = vmatpush1.msra.mxu0 0.0
    %221 = vmatprep.subr.mxu0 0.0
    %222 = vmatpush1.msra.mxu0 0.0
    %223 = vmatprep.subr.mxu0 0.0
    %224 = vmatpush1.msra.mxu0 0.0
    %225 = vmatprep.subr.mxu0 0.0
    %226 = vmatpush1.msra.mxu0 0.0
    %227 = vmatprep.subr.mxu0 0.0
    %228 = vmatpush1.msra.mxu0 0.0
    %229 = vmatprep.subr.mxu0 0.0
    %230 = vmatpush1.msra.mxu0 0.0
    %231 = vmatprep.subr.mxu0 0.0
    %232 = vmatpush1.msra.mxu0 0.0
    %233 = vmatprep.subr.mxu0 0.0
    %234 = vmatpush1.msra.mxu0 0.0
    %235 = vmatprep.subr.mxu0 0.0
    %236 = vmatpush1.msra.mxu0 0.0
    %237 = vmatprep.subr.mxu0 0.0
    %238 = vmatpush1.msra.mxu0 0.0
    %239 = vmatprep.subr.mxu0 0.0
    %240 = vmatpush1.msra.mxu0 0.0
    %241 = vmatprep.subr.mxu0 0.0
    %242 = vmatpush1.msra.mxu0 0.0
    %243 = vmatprep.subr.mxu0 0.0
    %244 = vmatpush1.msra.mxu0 0.0
    %245 = vmatprep.subr.mxu0 0.0
    %246 = vmatpush1.msra.mxu0 0.0
    %247 = vmatprep.subr.mxu0 0.0
    %248 = vmatpush1.msra.mxu0 0.0
    %249 = vmatprep.subr.mxu0 0.0
    %250 = vmatpush1.msra.mxu0 0.0
    %251 = vmatprep.subr.mxu0 0.0
    %252 = vmatpush1.msra.mxu0 0.0
    %253 = vmatprep.subr.mxu0 0.0
    %254 = vmatpush1.msra.mxu0 0.0
    %255 = vmatprep.subr.mxu0 0.0
    %256 = vmatpush1.msra.mxu0 0.0
    %257 = vmatprep.subr.mxu0 0.0
    %258 = vmatpush1.msra.mxu0 0.0
    %259 = vmatprep.subr.mxu0 0.0
    %260 = vmatpush1.msra.mxu0 0.0
    %261 = vmatprep.subr.mxu0 0.0
    %262 = vmatpush1.msra.mxu0 0.0
    %263 = vmatprep.subr.mxu0 0.0
    %264 = vmatpush1.msra.mxu0 0.0
    %265 = vmatprep.subr.mxu0 0.0
    %266 = vmatpush1.msra.mxu0 0.0
    %267 = vmatprep.subr.mxu0 0.0
    %268 = vmatpush1.msra.mxu0 0.0
    %269 = vmatprep.mubr.f32.mxu0 0.0
    %270 = vmatmul.mubr.f32.gmra.mrb[0].mxu0 %v203
    %v271 = vpop.f32.mrb[0].mxu0
    %v272 = vadd.f32 %v49, %v271
    %v273 = vpop.f32.mrb[0].mxu0
    %274 = vdwg.mxu0
    %s275 = scalar_lea.vmem %s0, 6
    %v276 = vld [vmem:[%s275] sm:$0x3]
    %v278 = vsel %vm51, %v276, 0
    %280 = vmatprep.subr.mxu0 0.0
    %281 = vmatpush1.msra.mxu0 %v36
    %282 = vmatprep.subr.mxu0 0.0
    %283 = vmatpush1.msra.mxu0 %v37
    %284 = vmatprep.subr.mxu0 0.0
    %285 = vmatpush1.msra.mxu0 0.0
    %286 = vmatprep.subr.mxu0 0.0
    %287 = vmatpush1.msra.mxu0 0.0
    %288 = vmatprep.subr.mxu0 0.0
    %289 = vmatpush1.msra.mxu0 0.0
    %290 = vmatprep.subr.mxu0 0.0
    %291 = vmatpush1.msra.mxu0 0.0
    %292 = vmatprep.subr.mxu0 0.0
    %293 = vmatpush1.msra.mxu0 0.0
    %294 = vmatprep.subr.mxu0 0.0
    %295 = vmatpush1.msra.mxu0 0.0
    %296 = vmatprep.subr.mxu0 0.0
    %297 = vmatpush1.msra.mxu0 0.0
    %298 = vmatprep.subr.mxu0 0.0
    %299 = vmatpush1.msra.mxu0 0.0
    %300 = vmatprep.subr.mxu0 0.0
    %301 = vmatpush1.msra.mxu0 0.0
    %302 = vmatprep.subr.mxu0 0.0
    %303 = vmatpush1.msra.mxu0 0.0
    %304 = vmatprep.subr.mxu0 0.0
    %305 = vmatpush1.msra.mxu0 0.0
    %306 = vmatprep.subr.mxu0 0.0
    %307 = vmatpush1.msra.mxu0 0.0
    %308 = vmatprep.subr.mxu0 0.0
    %309 = vmatpush1.msra.mxu0 0.0
    %310 = vmatprep.subr.mxu0 0.0
    %311 = vmatpush1.msra.mxu0 0.0
    %312 = vmatprep.subr.mxu0 0.0
    %313 = vmatpush1.msra.mxu0 0.0
    %314 = vmatprep.subr.mxu0 0.0
    %315 = vmatpush1.msra.mxu0 0.0
    %316 = vmatprep.subr.mxu0 0.0
    %317 = vmatpush1.msra.mxu0 0.0
    %318 = vmatprep.subr.mxu0 0.0
    %319 = vmatpush1.msra.mxu0 0.0
    %320 = vmatprep.subr.mxu0 0.0
    %321 = vmatpush1.msra.mxu0 0.0
    %322 = vmatprep.subr.mxu0 0.0
    %323 = vmatpush1.msra.mxu0 0.0
    %324 = vmatprep.subr.mxu0 0.0
    %325 = vmatpush1.msra.mxu0 0.0
    %326 = vmatprep.subr.mxu0 0.0
    %327 = vmatpush1.msra.mxu0 0.0
    %328 = vmatprep.subr.mxu0 0.0
    %329 = vmatpush1.msra.mxu0 0.0
    %330 = vmatprep.subr.mxu0 0.0
    %331 = vmatpush1.msra.mxu0 0.0
    %332 = vmatprep.subr.mxu0 0.0
    %333 = vmatpush1.msra.mxu0 0.0
    %334 = vmatprep.subr.mxu0 0.0
    %335 = vmatpush1.msra.mxu0 0.0
    %336 = vmatprep.subr.mxu0 0.0
    %337 = vmatpush1.msra.mxu0 0.0
    %338 = vmatprep.subr.mxu0 0.0
    %339 = vmatpush1.msra.mxu0 0.0
    %340 = vmatprep.subr.mxu0 0.0
    %341 = vmatpush1.msra.mxu0 0.0
    %342 = vmatprep.subr.mxu0 0.0
    %343 = vmatpush1.msra.mxu0 0.0
    %344 = vmatprep.mubr.f32.mxu0 0.0
    %345 = vmatmul.mubr.f32.gmra.mrb[0].mxu0 %v278
    %v346 = vpop.f32.mrb[0].mxu0
    %v347 = vadd.f32 %v49, %v346
    %v348 = vpop.f32.mrb[0].mxu0
    %349 = vdwg.mxu0
    %s350 = scalar_lea.vmem %s0, 8
    %v351 = vld [vmem:[%s350] sm:$0x3]
    %v353 = vsel %vm51, %v351, 0
    %355 = vmatprep.subr.mxu0 0.0
    %356 = vmatpush1.msra.mxu0 %v36
    %357 = vmatprep.subr.mxu0 0.0
    %358 = vmatpush1.msra.mxu0 %v37
    %359 = vmatprep.subr.mxu0 0.0
    %360 = vmatpush1.msra.mxu0 0.0
    %361 = vmatprep.subr.mxu0 0.0
    %362 = vmatpush1.msra.mxu0 0.0
    %363 = vmatprep.subr.mxu0 0.0
    %364 = vmatpush1.msra.mxu0 0.0
    %365 = vmatprep.subr.mxu0 0.0
    %366 = vmatpush1.msra.mxu0 0.0
    %367 = vmatprep.subr.mxu0 0.0
    %368 = vmatpush1.msra.mxu0 0.0
    %369 = vmatprep.subr.mxu0 0.0
    %370 = vmatpush1.msra.mxu0 0.0
    %371 = vmatprep.subr.mxu0 0.0
    %372 = vmatpush1.msra.mxu0 0.0
    %373 = vmatprep.subr.mxu0 0.0
    %374 = vmatpush1.msra.mxu0 0.0
    %375 = vmatprep.subr.mxu0 0.0
    %376 = vmatpush1.msra.mxu0 0.0
    %377 = vmatprep.subr.mxu0 0.0
    %378 = vmatpush1.msra.mxu0 0.0
    %379 = vmatprep.subr.mxu0 0.0
    %380 = vmatpush1.msra.mxu0 0.0
    %381 = vmatprep.subr.mxu0 0.0
    %382 = vmatpush1.msra.mxu0 0.0
    %383 = vmatprep.subr.mxu0 0.0
    %384 = vmatpush1.msra.mxu0 0.0
    %385 = vmatprep.subr.mxu0 0.0
    %386 = vmatpush1.msra.mxu0 0.0
    %387 = vmatprep.subr.mxu0 0.0
    %388 = vmatpush1.msra.mxu0 0.0
    %389 = vmatprep.subr.mxu0 0.0
    %390 = vmatpush1.msra.mxu0 0.0
    %391 = vmatprep.subr.mxu0 0.0
    %392 = vmatpush1.msra.mxu0 0.0
    %393 = vmatprep.subr.mxu0 0.0
    %394 = vmatpush1.msra.mxu0 0.0
    %395 = vmatprep.subr.mxu0 0.0
    %396 = vmatpush1.msra.mxu0 0.0
    %397 = vmatprep.subr.mxu0 0.0
    %398 = vmatpush1.msra.mxu0 0.0
    %399 = vmatprep.subr.mxu0 0.0
    %400 = vmatpush1.msra.mxu0 0.0
    %401 = vmatprep.subr.mxu0 0.0
    %402 = vmatpush1.msra.mxu0 0.0
    %403 = vmatprep.subr.mxu0 0.0
    %404 = vmatpush1.msra.mxu0 0.0
    %405 = vmatprep.subr.mxu0 0.0
    %406 = vmatpush1.msra.mxu0 0.0
    %407 = vmatprep.subr.mxu0 0.0
    %408 = vmatpush1.msra.mxu0 0.0
    %409 = vmatprep.subr.mxu0 0.0
    %410 = vmatpush1.msra.mxu0 0.0
    %411 = vmatprep.subr.mxu0 0.0
    %412 = vmatpush1.msra.mxu0 0.0
    %413 = vmatprep.subr.mxu0 0.0
    %414 = vmatpush1.msra.mxu0 0.0
    %415 = vmatprep.subr.mxu0 0.0
    %416 = vmatpush1.msra.mxu0 0.0
    %417 = vmatprep.subr.mxu0 0.0
    %418 = vmatpush1.msra.mxu0 0.0
    %419 = vmatprep.mubr.f32.mxu0 0.0
    %420 = vmatmul.mubr.f32.gmra.mrb[0].mxu0 %v353
    %v421 = vpop.f32.mrb[0].mxu0
    %v422 = vadd.f32 %v49, %v421
    %v423 = vpop.f32.mrb[0].mxu0
    %424 = vdwg.mxu0
    %s425 = scalar_lea.vmem %s0, 10
    %v426 = vld [vmem:[%s425] sm:$0x3]
    %v428 = vsel %vm51, %v426, 0
    %430 = vmatprep.subr.mxu0 0.0
    %431 = vmatpush1.msra.mxu0 %v36
    %432 = vmatprep.subr.mxu0 0.0
    %433 = vmatpush1.msra.mxu0 %v37
    %434 = vmatprep.subr.mxu0 0.0
    %435 = vmatpush1.msra.mxu0 0.0
    %436 = vmatprep.subr.mxu0 0.0
    %437 = vmatpush1.msra.mxu0 0.0
    %438 = vmatprep.subr.mxu0 0.0
    %439 = vmatpush1.msra.mxu0 0.0
    %440 = vmatprep.subr.mxu0 0.0
    %441 = vmatpush1.msra.mxu0 0.0
    %442 = vmatprep.subr.mxu0 0.0
    %443 = vmatpush1.msra.mxu0 0.0
    %444 = vmatprep.subr.mxu0 0.0
    %445 = vmatpush1.msra.mxu0 0.0
    %446 = vmatprep.subr.mxu0 0.0
    %447 = vmatpush1.msra.mxu0 0.0
    %448 = vmatprep.subr.mxu0 0.0
    %449 = vmatpush1.msra.mxu0 0.0
    %450 = vmatprep.subr.mxu0 0.0
    %451 = vmatpush1.msra.mxu0 0.0
    %452 = vmatprep.subr.mxu0 0.0
    %453 = vmatpush1.msra.mxu0 0.0
    %454 = vmatprep.subr.mxu0 0.0
    %455 = vmatpush1.msra.mxu0 0.0
    %456 = vmatprep.subr.mxu0 0.0
    %457 = vmatpush1.msra.mxu0 0.0
    %458 = vmatprep.subr.mxu0 0.0
    %459 = vmatpush1.msra.mxu0 0.0
    %460 = vmatprep.subr.mxu0 0.0
    %461 = vmatpush1.msra.mxu0 0.0
    %462 = vmatprep.subr.mxu0 0.0
    %463 = vmatpush1.msra.mxu0 0.0
    %464 = vmatprep.subr.mxu0 0.0
    %465 = vmatpush1.msra.mxu0 0.0
    %466 = vmatprep.subr.mxu0 0.0
    %467 = vmatpush1.msra.mxu0 0.0
    %468 = vmatprep.subr.mxu0 0.0
    %469 = vmatpush1.msra.mxu0 0.0
    %470 = vmatprep.subr.mxu0 0.0
    %471 = vmatpush1.msra.mxu0 0.0
    %472 = vmatprep.subr.mxu0 0.0
    %473 = vmatpush1.msra.mxu0 0.0
    %474 = vmatprep.subr.mxu0 0.0
    %475 = vmatpush1.msra.mxu0 0.0
    %476 = vmatprep.subr.mxu0 0.0
    %477 = vmatpush1.msra.mxu0 0.0
    %478 = vmatprep.subr.mxu0 0.0
    %479 = vmatpush1.msra.mxu0 0.0
    %480 = vmatprep.subr.mxu0 0.0
    %481 = vmatpush1.msra.mxu0 0.0
    %482 = vmatprep.subr.mxu0 0.0
    %483 = vmatpush1.msra.mxu0 0.0
    %484 = vmatprep.subr.mxu0 0.0
    %485 = vmatpush1.msra.mxu0 0.0
    %486 = vmatprep.subr.mxu0 0.0
    %487 = vmatpush1.msra.mxu0 0.0
    %488 = vmatprep.subr.mxu0 0.0
    %489 = vmatpush1.msra.mxu0 0.0
    %490 = vmatprep.subr.mxu0 0.0
    %491 = vmatpush1.msra.mxu0 0.0
    %492 = vmatprep.subr.mxu0 0.0
    %493 = vmatpush1.msra.mxu0 0.0
    %494 = vmatprep.mubr.f32.mxu0 0.0
    %495 = vmatmul.mubr.f32.gmra.mrb[0].mxu0 %v428
    %v496 = vpop.f32.mrb[0].mxu0
    %v497 = vadd.f32 %v49, %v496
    %v498 = vpop.f32.mrb[0].mxu0
    %499 = vdwg.mxu0
    %s500 = scalar_lea.vmem %s0, 12
    %v501 = vld [vmem:[%s500] sm:$0x3]
    %v503 = vsel %vm51, %v501, 0
    %505 = vmatprep.subr.mxu0 0.0
    %506 = vmatpush1.msra.mxu0 %v36
    %507 = vmatprep.subr.mxu0 0.0
    %508 = vmatpush1.msra.mxu0 %v37
    %509 = vmatprep.subr.mxu0 0.0
    %510 = vmatpush1.msra.mxu0 0.0
    %511 = vmatprep.subr.mxu0 0.0
    %512 = vmatpush1.msra.mxu0 0.0
    %513 = vmatprep.subr.mxu0 0.0
    %514 = vmatpush1.msra.mxu0 0.0
    %515 = vmatprep.subr.mxu0 0.0
    %516 = vmatpush1.msra.mxu0 0.0
    %517 = vmatprep.subr.mxu0 0.0
    %518 = vmatpush1.msra.mxu0 0.0
    %519 = vmatprep.subr.mxu0 0.0
    %520 = vmatpush1.msra.mxu0 0.0
    %521 = vmatprep.subr.mxu0 0.0
    %522 = vmatpush1.msra.mxu0 0.0
    %523 = vmatprep.subr.mxu0 0.0
    %524 = vmatpush1.msra.mxu0 0.0
    %525 = vmatprep.subr.mxu0 0.0
    %526 = vmatpush1.msra.mxu0 0.0
    %527 = vmatprep.subr.mxu0 0.0
    %528 = vmatpush1.msra.mxu0 0.0
    %529 = vmatprep.subr.mxu0 0.0
    %530 = vmatpush1.msra.mxu0 0.0
    %531 = vmatprep.subr.mxu0 0.0
    %532 = vmatpush1.msra.mxu0 0.0
    %533 = vmatprep.subr.mxu0 0.0
    %534 = vmatpush1.msra.mxu0 0.0
    %535 = vmatprep.subr.mxu0 0.0
    %536 = vmatpush1.msra.mxu0 0.0
    %537 = vmatprep.subr.mxu0 0.0
    %538 = vmatpush1.msra.mxu0 0.0
    %539 = vmatprep.subr.mxu0 0.0
    %540 = vmatpush1.msra.mxu0 0.0
    %541 = vmatprep.subr.mxu0 0.0
    %542 = vmatpush1.msra.mxu0 0.0
    %543 = vmatprep.subr.mxu0 0.0
    %544 = vmatpush1.msra.mxu0 0.0
    %545 = vmatprep.subr.mxu0 0.0
    %546 = vmatpush1.msra.mxu0 0.0
    %547 = vmatprep.subr.mxu0 0.0
    %548 = vmatpush1.msra.mxu0 0.0
    %549 = vmatprep.subr.mxu0 0.0
    %550 = vmatpush1.msra.mxu0 0.0
    %551 = vmatprep.subr.mxu0 0.0
    %552 = vmatpush1.msra.mxu0 0.0
    %553 = vmatprep.subr.mxu0 0.0
    %554 = vmatpush1.msra.mxu0 0.0
    %555 = vmatprep.subr.mxu0 0.0
    %556 = vmatpush1.msra.mxu0 0.0
    %557 = vmatprep.subr.mxu0 0.0
    %558 = vmatpush1.msra.mxu0 0.0
    %559 = vmatprep.subr.mxu0 0.0
    %560 = vmatpush1.msra.mxu0 0.0
    %561 = vmatprep.subr.mxu0 0.0
    %562 = vmatpush1.msra.mxu0 0.0
    %563 = vmatprep.subr.mxu0 0.0
    %564 = vmatpush1.msra.mxu0 0.0
    %565 = vmatprep.subr.mxu0 0.0
    %566 = vmatpush1.msra.mxu0 0.0
    %567 = vmatprep.subr.mxu0 0.0
    %568 = vmatpush1.msra.mxu0 0.0
    %569 = vmatprep.mubr.f32.mxu0 0.0
    %570 = vmatmul.mubr.f32.gmra.mrb[0].mxu0 %v503
    %v571 = vpop.f32.mrb[0].mxu0
    %v572 = vadd.f32 %v49, %v571
    %v573 = vpop.f32.mrb[0].mxu0
    %574 = vdwg.mxu0
    %s575 = scalar_lea.vmem %s0, 14
    %v576 = vld [vmem:[%s575] sm:$0x3]
    %v578 = vsel %vm51, %v576, 0
    %580 = vmatprep.subr.mxu0 0.0
    %581 = vmatpush1.msra.mxu0 %v36
    %582 = vmatprep.subr.mxu0 0.0
    %583 = vmatpush1.msra.mxu0 %v37
    %584 = vmatprep.subr.mxu0 0.0
    %585 = vmatpush1.msra.mxu0 0.0
    %586 = vmatprep.subr.mxu0 0.0
    %587 = vmatpush1.msra.mxu0 0.0
    %588 = vmatprep.subr.mxu0 0.0
    %589 = vmatpush1.msra.mxu0 0.0
    %590 = vmatprep.subr.mxu0 0.0
    %591 = vmatpush1.msra.mxu0 0.0
    %592 = vmatprep.subr.mxu0 0.0
    %593 = vmatpush1.msra.mxu0 0.0
    %594 = vmatprep.subr.mxu0 0.0
    %595 = vmatpush1.msra.mxu0 0.0
    %596 = vmatprep.subr.mxu0 0.0
    %597 = vmatpush1.msra.mxu0 0.0
    %598 = vmatprep.subr.mxu0 0.0
    %599 = vmatpush1.msra.mxu0 0.0
    %600 = vmatprep.subr.mxu0 0.0
    %601 = vmatpush1.msra.mxu0 0.0
    %602 = vmatprep.subr.mxu0 0.0
    %603 = vmatpush1.msra.mxu0 0.0
    %604 = vmatprep.subr.mxu0 0.0
    %605 = vmatpush1.msra.mxu0 0.0
    %606 = vmatprep.subr.mxu0 0.0
    %607 = vmatpush1.msra.mxu0 0.0
    %608 = vmatprep.subr.mxu0 0.0
    %609 = vmatpush1.msra.mxu0 0.0
    %610 = vmatprep.subr.mxu0 0.0
    %611 = vmatpush1.msra.mxu0 0.0
    %612 = vmatprep.subr.mxu0 0.0
    %613 = vmatpush1.msra.mxu0 0.0
    %614 = vmatprep.subr.mxu0 0.0
    %615 = vmatpush1.msra.mxu0 0.0
    %616 = vmatprep.subr.mxu0 0.0
    %617 = vmatpush1.msra.mxu0 0.0
    %618 = vmatprep.subr.mxu0 0.0
    %619 = vmatpush1.msra.mxu0 0.0
    %620 = vmatprep.subr.mxu0 0.0
    %621 = vmatpush1.msra.mxu0 0.0
    %622 = vmatprep.subr.mxu0 0.0
    %623 = vmatpush1.msra.mxu0 0.0
    %624 = vmatprep.subr.mxu0 0.0
    %625 = vmatpush1.msra.mxu0 0.0
    %626 = vmatprep.subr.mxu0 0.0
    %627 = vmatpush1.msra.mxu0 0.0
    %628 = vmatprep.subr.mxu0 0.0
    %629 = vmatpush1.msra.mxu0 0.0
    %630 = vmatprep.subr.mxu0 0.0
    %631 = vmatpush1.msra.mxu0 0.0
    %632 = vmatprep.subr.mxu0 0.0
    %633 = vmatpush1.msra.mxu0 0.0
    %634 = vmatprep.subr.mxu0 0.0
    %635 = vmatpush1.msra.mxu0 0.0
    %636 = vmatprep.subr.mxu0 0.0
    %637 = vmatpush1.msra.mxu0 0.0
    %638 = vmatprep.subr.mxu0 0.0
    %639 = vmatpush1.msra.mxu0 0.0
    %640 = vmatprep.subr.mxu0 0.0
    %641 = vmatpush1.msra.mxu0 0.0
    %642 = vmatprep.subr.mxu0 0.0
    %643 = vmatpush1.msra.mxu0 0.0
    %644 = vmatprep.mubr.f32.mxu0 0.0
    %645 = vmatmul.mubr.f32.gmra.mrb[0].mxu0 %v578
    %v646 = vpop.f32.mrb[0].mxu0
    %v647 = vadd.f32 %v49, %v646
    %v648 = vpop.f32.mrb[0].mxu0
    %649 = vdwg.mxu0
    %v650 = vld [vmem:[%s1] sm:$0x3]
    %v652 = vlaneseq
    %v653 = vshrl.u32 %v652, 7
    %v654 = vsub.s32 0, %v653
    %v655 = vrot.slane %v43, %v654
    %vm657 = vcmask 261120
    %v659 = vsel %vm657, %v650, 0
    %661 = vmatprep.subr.mxu0 0.0
    %662 = vmatpush1.msra.mxu0 %v39
    %663 = vmatprep.subr.mxu0 0.0
    %664 = vmatpush1.msra.mxu0 %v40
    %665 = vmatprep.subr.mxu0 0.0
    %666 = vmatpush1.msra.mxu0 %v41
    %667 = vmatprep.subr.mxu0 0.0
    %668 = vmatpush1.msra.mxu0 %v42
    %669 = vmatprep.subr.mxu0 0.0
    %670 = vmatpush1.msra.mxu0 0.0
    %671 = vmatprep.subr.mxu0 0.0
    %672 = vmatpush1.msra.mxu0 0.0
    %673 = vmatprep.subr.mxu0 0.0
    %674 = vmatpush1.msra.mxu0 0.0
    %675 = vmatprep.subr.mxu0 0.0
    %676 = vmatpush1.msra.mxu0 0.0
    %677 = vmatprep.subr.mxu0 0.0
    %678 = vmatpush1.msra.mxu0 0.0
    %679 = vmatprep.subr.mxu0 0.0
    %680 = vmatpush1.msra.mxu0 0.0
    %681 = vmatprep.subr.mxu0 0.0
    %682 = vmatpush1.msra.mxu0 0.0
    %683 = vmatprep.subr.mxu0 0.0
    %684 = vmatpush1.msra.mxu0 0.0
    %685 = vmatprep.subr.mxu0 0.0
    %686 = vmatpush1.msra.mxu0 0.0
    %687 = vmatprep.subr.mxu0 0.0
    %688 = vmatpush1.msra.mxu0 0.0
    %689 = vmatprep.subr.mxu0 0.0
    %690 = vmatpush1.msra.mxu0 0.0
    %691 = vmatprep.subr.mxu0 0.0
    %692 = vmatpush1.msra.mxu0 0.0
    %693 = vmatprep.subr.mxu0 0.0
    %694 = vmatpush1.msra.mxu0 0.0
    %695 = vmatprep.subr.mxu0 0.0
    %696 = vmatpush1.msra.mxu0 0.0
    %697 = vmatprep.subr.mxu0 0.0
    %698 = vmatpush1.msra.mxu0 0.0
    %699 = vmatprep.subr.mxu0 0.0
    %700 = vmatpush1.msra.mxu0 0.0
    %701 = vmatprep.subr.mxu0 0.0
    %702 = vmatpush1.msra.mxu0 0.0
    %703 = vmatprep.subr.mxu0 0.0
    %704 = vmatpush1.msra.mxu0 0.0
    %705 = vmatprep.subr.mxu0 0.0
    %706 = vmatpush1.msra.mxu0 0.0
    %707 = vmatprep.subr.mxu0 0.0
    %708 = vmatpush1.msra.mxu0 0.0
    %709 = vmatprep.subr.mxu0 0.0
    %710 = vmatpush1.msra.mxu0 0.0
    %711 = vmatprep.subr.mxu0 0.0
    %712 = vmatpush1.msra.mxu0 0.0
    %713 = vmatprep.subr.mxu0 0.0
    %714 = vmatpush1.msra.mxu0 0.0
    %715 = vmatprep.subr.mxu0 0.0
    %716 = vmatpush1.msra.mxu0 0.0
    %717 = vmatprep.subr.mxu0 0.0
    %718 = vmatpush1.msra.mxu0 0.0
    %719 = vmatprep.subr.mxu0 0.0
    %720 = vmatpush1.msra.mxu0 0.0
    %721 = vmatprep.subr.mxu0 0.0
    %722 = vmatpush1.msra.mxu0 0.0
    %723 = vmatprep.subr.mxu0 0.0
    %724 = vmatpush1.msra.mxu0 0.0
    %725 = vmatprep.mubr.f32.mxu0 0.0
    %726 = vmatmul.mubr.f32.gmra.mrb[0].mxu0 %v659
    %v727 = vpop.f32.mrb[0].mxu0
    %v728 = vadd.f32 %v655, %v727
    %v729 = vpop.f32.mrb[0].mxu0
    %730 = vdwg.mxu0
    %v731 = vadd.f32 %v122, %v728
    %v732 = vxor.u32 %v731, 2147483648
    %v733 = vmul.f32 %v732, 1.442695
    %v734 = vpow.pop %v733
    %v735 = vadd.f32 %v734, 1.0
    %v736 = vrcp.pop %v735
    %v737 = vmul.f32 1.0, %v736
    %739 = vrot.lane.b32.xlu0 %v728, 64
    %v740 = vpop.permute.xlu0 %739
    %v742 = vmul.f32 %v737, %v740
    %744 = vrot.lane.b32.xlu0 %v742, 64
    %v745 = vpop.permute.xlu0 %744
    %v747 = vadd.f32 %v122, %v745
    %v748 = vtanh.pop %v747
    %v749 = vsub.f32 1.0, %v737
    %751 = vrot.lane.b32.xlu0 %v748, 96
    %v752 = vpop.permute.xlu0 %751
    %v754 = vmul.f32 %v749, %v752
    %755 = vrot.lane.b32.xlu0 %v650, 32
    %v756 = vpop.permute.xlu0 %755
    %v758 = vmul.f32 %v737, %v756
    %v759 = vadd.f32 %v754, %v758
    %761 = vrot.lane.b32.xlu0 %v759, 96
    %v762 = vpop.permute.xlu0 %761
    %v763 = vsel %vm657, %v762, 0
    %765 = vmatprep.subr.mxu0 0.0
    %766 = vmatpush1.msra.mxu0 %v39
    %767 = vmatprep.subr.mxu0 0.0
    %768 = vmatpush1.msra.mxu0 %v40
    %769 = vmatprep.subr.mxu0 0.0
    %770 = vmatpush1.msra.mxu0 %v41
    %771 = vmatprep.subr.mxu0 0.0
    %772 = vmatpush1.msra.mxu0 %v42
    %773 = vmatprep.subr.mxu0 0.0
    %774 = vmatpush1.msra.mxu0 0.0
    %775 = vmatprep.subr.mxu0 0.0
    %776 = vmatpush1.msra.mxu0 0.0
    %777 = vmatprep.subr.mxu0 0.0
    %778 = vmatpush1.msra.mxu0 0.0
    %779 = vmatprep.subr.mxu0 0.0
    %780 = vmatpush1.msra.mxu0 0.0
    %781 = vmatprep.subr.mxu0 0.0
    %782 = vmatpush1.msra.mxu0 0.0
    %783 = vmatprep.subr.mxu0 0.0
    %784 = vmatpush1.msra.mxu0 0.0
    %785 = vmatprep.subr.mxu0 0.0
    %786 = vmatpush1.msra.mxu0 0.0
    %787 = vmatprep.subr.mxu0 0.0
    %788 = vmatpush1.msra.mxu0 0.0
    %789 = vmatprep.subr.mxu0 0.0
    %790 = vmatpush1.msra.mxu0 0.0
    %791 = vmatprep.subr.mxu0 0.0
    %792 = vmatpush1.msra.mxu0 0.0
    %793 = vmatprep.subr.mxu0 0.0
    %794 = vmatpush1.msra.mxu0 0.0
    %795 = vmatprep.subr.mxu0 0.0
    %796 = vmatpush1.msra.mxu0 0.0
    %797 = vmatprep.subr.mxu0 0.0
    %798 = vmatpush1.msra.mxu0 0.0
    %799 = vmatprep.subr.mxu0 0.0
    %800 = vmatpush1.msra.mxu0 0.0
    %801 = vmatprep.subr.mxu0 0.0
    %802 = vmatpush1.msra.mxu0 0.0
    %803 = vmatprep.subr.mxu0 0.0
    %804 = vmatpush1.msra.mxu0 0.0
    %805 = vmatprep.subr.mxu0 0.0
    %806 = vmatpush1.msra.mxu0 0.0
    %807 = vmatprep.subr.mxu0 0.0
    %808 = vmatpush1.msra.mxu0 0.0
    %809 = vmatprep.subr.mxu0 0.0
    %810 = vmatpush1.msra.mxu0 0.0
    %811 = vmatprep.subr.mxu0 0.0
    %812 = vmatpush1.msra.mxu0 0.0
    %813 = vmatprep.subr.mxu0 0.0
    %814 = vmatpush1.msra.mxu0 0.0
    %815 = vmatprep.subr.mxu0 0.0
    %816 = vmatpush1.msra.mxu0 0.0
    %817 = vmatprep.subr.mxu0 0.0
    %818 = vmatpush1.msra.mxu0 0.0
    %819 = vmatprep.subr.mxu0 0.0
    %820 = vmatpush1.msra.mxu0 0.0
    %821 = vmatprep.subr.mxu0 0.0
    %822 = vmatpush1.msra.mxu0 0.0
    %823 = vmatprep.subr.mxu0 0.0
    %824 = vmatpush1.msra.mxu0 0.0
    %825 = vmatprep.subr.mxu0 0.0
    %826 = vmatpush1.msra.mxu0 0.0
    %827 = vmatprep.subr.mxu0 0.0
    %828 = vmatpush1.msra.mxu0 0.0
    %829 = vmatprep.mubr.f32.mxu0 0.0
    %830 = vmatmul.mubr.f32.gmra.mrb[0].mxu0 %v763
    %v831 = vpop.f32.mrb[0].mxu0
    %v832 = vadd.f32 %v655, %v831
    %v833 = vpop.f32.mrb[0].mxu0
    %834 = vdwg.mxu0
    %v835 = vadd.f32 %v197, %v832
    %v836 = vxor.u32 %v835, 2147483648
    %v837 = vmul.f32 %v836, 1.442695
    %v838 = vpow.pop %v837
    %v839 = vadd.f32 %v838, 1.0
    %v840 = vrcp.pop %v839
    %v841 = vmul.f32 1.0, %v840
    %843 = vrot.lane.b32.xlu0 %v832, 64
    %v844 = vpop.permute.xlu0 %843
    %v846 = vmul.f32 %v841, %v844
    %848 = vrot.lane.b32.xlu0 %v846, 64
    %v849 = vpop.permute.xlu0 %848
    %v851 = vadd.f32 %v197, %v849
    %v852 = vtanh.pop %v851
    %v853 = vsub.f32 1.0, %v841
    %855 = vrot.lane.b32.xlu0 %v852, 96
    %v856 = vpop.permute.xlu0 %855
    %v858 = vmul.f32 %v853, %v856
    %v859 = vmul.f32 %v841, %v759
    %v860 = vadd.f32 %v858, %v859
    %862 = vrot.lane.b32.xlu0 %v860, 96
    %v863 = vpop.permute.xlu0 %862
    %v864 = vsel %vm657, %v863, 0
    %866 = vmatprep.subr.mxu0 0.0
    %867 = vmatpush1.msra.mxu0 %v39
    %868 = vmatprep.subr.mxu0 0.0
    %869 = vmatpush1.msra.mxu0 %v40
    %870 = vmatprep.subr.mxu0 0.0
    %871 = vmatpush1.msra.mxu0 %v41
    %872 = vmatprep.subr.mxu0 0.0
    %873 = vmatpush1.msra.mxu0 %v42
    %874 = vmatprep.subr.mxu0 0.0
    %875 = vmatpush1.msra.mxu0 0.0
    %876 = vmatprep.subr.mxu0 0.0
    %877 = vmatpush1.msra.mxu0 0.0
    %878 = vmatprep.subr.mxu0 0.0
    %879 = vmatpush1.msra.mxu0 0.0
    %880 = vmatprep.subr.mxu0 0.0
    %881 = vmatpush1.msra.mxu0 0.0
    %882 = vmatprep.subr.mxu0 0.0
    %883 = vmatpush1.msra.mxu0 0.0
    %884 = vmatprep.subr.mxu0 0.0
    %885 = vmatpush1.msra.mxu0 0.0
    %886 = vmatprep.subr.mxu0 0.0
    %887 = vmatpush1.msra.mxu0 0.0
    %888 = vmatprep.subr.mxu0 0.0
    %889 = vmatpush1.msra.mxu0 0.0
    %890 = vmatprep.subr.mxu0 0.0
    %891 = vmatpush1.msra.mxu0 0.0
    %892 = vmatprep.subr.mxu0 0.0
    %893 = vmatpush1.msra.mxu0 0.0
    %894 = vmatprep.subr.mxu0 0.0
    %895 = vmatpush1.msra.mxu0 0.0
    %896 = vmatprep.subr.mxu0 0.0
    %897 = vmatpush1.msra.mxu0 0.0
    %898 = vmatprep.subr.mxu0 0.0
    %899 = vmatpush1.msra.mxu0 0.0
    %900 = vmatprep.subr.mxu0 0.0
    %901 = vmatpush1.msra.mxu0 0.0
    %902 = vmatprep.subr.mxu0 0.0
    %903 = vmatpush1.msra.mxu0 0.0
    %904 = vmatprep.subr.mxu0 0.0
    %905 = vmatpush1.msra.mxu0 0.0
    %906 = vmatprep.subr.mxu0 0.0
    %907 = vmatpush1.msra.mxu0 0.0
    %908 = vmatprep.subr.mxu0 0.0
    %909 = vmatpush1.msra.mxu0 0.0
    %910 = vmatprep.subr.mxu0 0.0
    %911 = vmatpush1.msra.mxu0 0.0
    %912 = vmatprep.subr.mxu0 0.0
    %913 = vmatpush1.msra.mxu0 0.0
    %914 = vmatprep.subr.mxu0 0.0
    %915 = vmatpush1.msra.mxu0 0.0
    %916 = vmatprep.subr.mxu0 0.0
    %917 = vmatpush1.msra.mxu0 0.0
    %918 = vmatprep.subr.mxu0 0.0
    %919 = vmatpush1.msra.mxu0 0.0
    %920 = vmatprep.subr.mxu0 0.0
    %921 = vmatpush1.msra.mxu0 0.0
    %922 = vmatprep.subr.mxu0 0.0
    %923 = vmatpush1.msra.mxu0 0.0
    %924 = vmatprep.subr.mxu0 0.0
    %925 = vmatpush1.msra.mxu0 0.0
    %926 = vmatprep.subr.mxu0 0.0
    %927 = vmatpush1.msra.mxu0 0.0
    %928 = vmatprep.subr.mxu0 0.0
    %929 = vmatpush1.msra.mxu0 0.0
    %930 = vmatprep.mubr.f32.mxu0 0.0
    %931 = vmatmul.mubr.f32.gmra.mrb[0].mxu0 %v864
    %v932 = vpop.f32.mrb[0].mxu0
    %v933 = vadd.f32 %v655, %v932
    %v934 = vpop.f32.mrb[0].mxu0
    %935 = vdwg.mxu0
    %v936 = vadd.f32 %v272, %v933
    %v937 = vxor.u32 %v936, 2147483648
    %v938 = vmul.f32 %v937, 1.442695
    %v939 = vpow.pop %v938
    %v940 = vadd.f32 %v939, 1.0
    %v941 = vrcp.pop %v940
    %v942 = vmul.f32 1.0, %v941
    %944 = vrot.lane.b32.xlu0 %v933, 64
    %v945 = vpop.permute.xlu0 %944
    %v947 = vmul.f32 %v942, %v945
    %949 = vrot.lane.b32.xlu0 %v947, 64
    %v950 = vpop.permute.xlu0 %949
    %v952 = vadd.f32 %v272, %v950
    %v953 = vtanh.pop %v952
    %v954 = vsub.f32 1.0, %v942
    %956 = vrot.lane.b32.xlu0 %v953, 96
    %v957 = vpop.permute.xlu0 %956
    %v959 = vmul.f32 %v954, %v957
    %v960 = vmul.f32 %v942, %v860
    %v961 = vadd.f32 %v959, %v960
    %963 = vrot.lane.b32.xlu0 %v961, 96
    %v964 = vpop.permute.xlu0 %963
    %v965 = vsel %vm657, %v964, 0
    %967 = vmatprep.subr.mxu0 0.0
    %968 = vmatpush1.msra.mxu0 %v39
    %969 = vmatprep.subr.mxu0 0.0
    %970 = vmatpush1.msra.mxu0 %v40
    %971 = vmatprep.subr.mxu0 0.0
    %972 = vmatpush1.msra.mxu0 %v41
    %973 = vmatprep.subr.mxu0 0.0
    %974 = vmatpush1.msra.mxu0 %v42
    %975 = vmatprep.subr.mxu0 0.0
    %976 = vmatpush1.msra.mxu0 0.0
    %977 = vmatprep.subr.mxu0 0.0
    %978 = vmatpush1.msra.mxu0 0.0
    %979 = vmatprep.subr.mxu0 0.0
    %980 = vmatpush1.msra.mxu0 0.0
    %981 = vmatprep.subr.mxu0 0.0
    %982 = vmatpush1.msra.mxu0 0.0
    %983 = vmatprep.subr.mxu0 0.0
    %984 = vmatpush1.msra.mxu0 0.0
    %985 = vmatprep.subr.mxu0 0.0
    %986 = vmatpush1.msra.mxu0 0.0
    %987 = vmatprep.subr.mxu0 0.0
    %988 = vmatpush1.msra.mxu0 0.0
    %989 = vmatprep.subr.mxu0 0.0
    %990 = vmatpush1.msra.mxu0 0.0
    %991 = vmatprep.subr.mxu0 0.0
    %992 = vmatpush1.msra.mxu0 0.0
    %993 = vmatprep.subr.mxu0 0.0
    %994 = vmatpush1.msra.mxu0 0.0
    %995 = vmatprep.subr.mxu0 0.0
    %996 = vmatpush1.msra.mxu0 0.0
    %997 = vmatprep.subr.mxu0 0.0
    %998 = vmatpush1.msra.mxu0 0.0
    %999 = vmatprep.subr.mxu0 0.0
    %1000 = vmatpush1.msra.mxu0 0.0
    %1001 = vmatprep.subr.mxu0 0.0
    %1002 = vmatpush1.msra.mxu0 0.0
    %1003 = vmatprep.subr.mxu0 0.0
    %1004 = vmatpush1.msra.mxu0 0.0
    %1005 = vmatprep.subr.mxu0 0.0
    %1006 = vmatpush1.msra.mxu0 0.0
    %1007 = vmatprep.subr.mxu0 0.0
    %1008 = vmatpush1.msra.mxu0 0.0
    %1009 = vmatprep.subr.mxu0 0.0
    %1010 = vmatpush1.msra.mxu0 0.0
    %1011 = vmatprep.subr.mxu0 0.0
    %1012 = vmatpush1.msra.mxu0 0.0
    %1013 = vmatprep.subr.mxu0 0.0
    %1014 = vmatpush1.msra.mxu0 0.0
    %1015 = vmatprep.subr.mxu0 0.0
    %1016 = vmatpush1.msra.mxu0 0.0
    %1017 = vmatprep.subr.mxu0 0.0
    %1018 = vmatpush1.msra.mxu0 0.0
    %1019 = vmatprep.subr.mxu0 0.0
    %1020 = vmatpush1.msra.mxu0 0.0
    %1021 = vmatprep.subr.mxu0 0.0
    %1022 = vmatpush1.msra.mxu0 0.0
    %1023 = vmatprep.subr.mxu0 0.0
    %1024 = vmatpush1.msra.mxu0 0.0
    %1025 = vmatprep.subr.mxu0 0.0
    %1026 = vmatpush1.msra.mxu0 0.0
    %1027 = vmatprep.subr.mxu0 0.0
    %1028 = vmatpush1.msra.mxu0 0.0
    %1029 = vmatprep.subr.mxu0 0.0
    %1030 = vmatpush1.msra.mxu0 0.0
    %1031 = vmatprep.mubr.f32.mxu0 0.0
    %1032 = vmatmul.mubr.f32.gmra.mrb[0].mxu0 %v965
    %v1033 = vpop.f32.mrb[0].mxu0
    %v1034 = vadd.f32 %v655, %v1033
    %v1035 = vpop.f32.mrb[0].mxu0
    %1036 = vdwg.mxu0
    %v1037 = vadd.f32 %v347, %v1034
    %v1038 = vxor.u32 %v1037, 2147483648
    %v1039 = vmul.f32 %v1038, 1.442695
    %v1040 = vpow.pop %v1039
    %v1041 = vadd.f32 %v1040, 1.0
    %v1042 = vrcp.pop %v1041
    %v1043 = vmul.f32 1.0, %v1042
    %1045 = vrot.lane.b32.xlu0 %v1034, 64
    %v1046 = vpop.permute.xlu0 %1045
    %v1048 = vmul.f32 %v1043, %v1046
    %1050 = vrot.lane.b32.xlu0 %v1048, 64
    %v1051 = vpop.permute.xlu0 %1050
    %v1053 = vadd.f32 %v347, %v1051
    %v1054 = vtanh.pop %v1053
    %v1055 = vsub.f32 1.0, %v1043
    %1057 = vrot.lane.b32.xlu0 %v1054, 96
    %v1058 = vpop.permute.xlu0 %1057
    %v1060 = vmul.f32 %v1055, %v1058
    %v1061 = vmul.f32 %v1043, %v961
    %v1062 = vadd.f32 %v1060, %v1061
    %1064 = vrot.lane.b32.xlu0 %v1062, 96
    %v1065 = vpop.permute.xlu0 %1064
    %v1066 = vsel %vm657, %v1065, 0
    %1068 = vmatprep.subr.mxu0 0.0
    %1069 = vmatpush1.msra.mxu0 %v39
    %1070 = vmatprep.subr.mxu0 0.0
    %1071 = vmatpush1.msra.mxu0 %v40
    %1072 = vmatprep.subr.mxu0 0.0
    %1073 = vmatpush1.msra.mxu0 %v41
    %1074 = vmatprep.subr.mxu0 0.0
    %1075 = vmatpush1.msra.mxu0 %v42
    %1076 = vmatprep.subr.mxu0 0.0
    %1077 = vmatpush1.msra.mxu0 0.0
    %1078 = vmatprep.subr.mxu0 0.0
    %1079 = vmatpush1.msra.mxu0 0.0
    %1080 = vmatprep.subr.mxu0 0.0
    %1081 = vmatpush1.msra.mxu0 0.0
    %1082 = vmatprep.subr.mxu0 0.0
    %1083 = vmatpush1.msra.mxu0 0.0
    %1084 = vmatprep.subr.mxu0 0.0
    %1085 = vmatpush1.msra.mxu0 0.0
    %1086 = vmatprep.subr.mxu0 0.0
    %1087 = vmatpush1.msra.mxu0 0.0
    %1088 = vmatprep.subr.mxu0 0.0
    %1089 = vmatpush1.msra.mxu0 0.0
    %1090 = vmatprep.subr.mxu0 0.0
    %1091 = vmatpush1.msra.mxu0 0.0
    %1092 = vmatprep.subr.mxu0 0.0
    %1093 = vmatpush1.msra.mxu0 0.0
    %1094 = vmatprep.subr.mxu0 0.0
    %1095 = vmatpush1.msra.mxu0 0.0
    %1096 = vmatprep.subr.mxu0 0.0
    %1097 = vmatpush1.msra.mxu0 0.0
    %1098 = vmatprep.subr.mxu0 0.0
    %1099 = vmatpush1.msra.mxu0 0.0
    %1100 = vmatprep.subr.mxu0 0.0
    %1101 = vmatpush1.msra.mxu0 0.0
    %1102 = vmatprep.subr.mxu0 0.0
    %1103 = vmatpush1.msra.mxu0 0.0
    %1104 = vmatprep.subr.mxu0 0.0
    %1105 = vmatpush1.msra.mxu0 0.0
    %1106 = vmatprep.subr.mxu0 0.0
    %1107 = vmatpush1.msra.mxu0 0.0
    %1108 = vmatprep.subr.mxu0 0.0
    %1109 = vmatpush1.msra.mxu0 0.0
    %1110 = vmatprep.subr.mxu0 0.0
    %1111 = vmatpush1.msra.mxu0 0.0
    %1112 = vmatprep.subr.mxu0 0.0
    %1113 = vmatpush1.msra.mxu0 0.0
    %1114 = vmatprep.subr.mxu0 0.0
    %1115 = vmatpush1.msra.mxu0 0.0
    %1116 = vmatprep.subr.mxu0 0.0
    %1117 = vmatpush1.msra.mxu0 0.0
    %1118 = vmatprep.subr.mxu0 0.0
    %1119 = vmatpush1.msra.mxu0 0.0
    %1120 = vmatprep.subr.mxu0 0.0
    %1121 = vmatpush1.msra.mxu0 0.0
    %1122 = vmatprep.subr.mxu0 0.0
    %1123 = vmatpush1.msra.mxu0 0.0
    %1124 = vmatprep.subr.mxu0 0.0
    %1125 = vmatpush1.msra.mxu0 0.0
    %1126 = vmatprep.subr.mxu0 0.0
    %1127 = vmatpush1.msra.mxu0 0.0
    %1128 = vmatprep.subr.mxu0 0.0
    %1129 = vmatpush1.msra.mxu0 0.0
    %1130 = vmatprep.subr.mxu0 0.0
    %1131 = vmatpush1.msra.mxu0 0.0
    %1132 = vmatprep.mubr.f32.mxu0 0.0
    %1133 = vmatmul.mubr.f32.gmra.mrb[0].mxu0 %v1066
    %v1134 = vpop.f32.mrb[0].mxu0
    %v1135 = vadd.f32 %v655, %v1134
    %v1136 = vpop.f32.mrb[0].mxu0
    %1137 = vdwg.mxu0
    %v1138 = vadd.f32 %v422, %v1135
    %v1139 = vxor.u32 %v1138, 2147483648
    %v1140 = vmul.f32 %v1139, 1.442695
    %v1141 = vpow.pop %v1140
    %v1142 = vadd.f32 %v1141, 1.0
    %v1143 = vrcp.pop %v1142
    %v1144 = vmul.f32 1.0, %v1143
    %1146 = vrot.lane.b32.xlu0 %v1135, 64
    %v1147 = vpop.permute.xlu0 %1146
    %v1149 = vmul.f32 %v1144, %v1147
    %1151 = vrot.lane.b32.xlu0 %v1149, 64
    %v1152 = vpop.permute.xlu0 %1151
    %v1154 = vadd.f32 %v422, %v1152
    %v1155 = vtanh.pop %v1154
    %v1156 = vsub.f32 1.0, %v1144
    %1158 = vrot.lane.b32.xlu0 %v1155, 96
    %v1159 = vpop.permute.xlu0 %1158
    %v1161 = vmul.f32 %v1156, %v1159
    %v1162 = vmul.f32 %v1144, %v1062
    %v1163 = vadd.f32 %v1161, %v1162
    %1165 = vrot.lane.b32.xlu0 %v1163, 96
    %v1166 = vpop.permute.xlu0 %1165
    %v1167 = vsel %vm657, %v1166, 0
    %1169 = vmatprep.subr.mxu0 0.0
    %1170 = vmatpush1.msra.mxu0 %v39
    %1171 = vmatprep.subr.mxu0 0.0
    %1172 = vmatpush1.msra.mxu0 %v40
    %1173 = vmatprep.subr.mxu0 0.0
    %1174 = vmatpush1.msra.mxu0 %v41
    %1175 = vmatprep.subr.mxu0 0.0
    %1176 = vmatpush1.msra.mxu0 %v42
    %1177 = vmatprep.subr.mxu0 0.0
    %1178 = vmatpush1.msra.mxu0 0.0
    %1179 = vmatprep.subr.mxu0 0.0
    %1180 = vmatpush1.msra.mxu0 0.0
    %1181 = vmatprep.subr.mxu0 0.0
    %1182 = vmatpush1.msra.mxu0 0.0
    %1183 = vmatprep.subr.mxu0 0.0
    %1184 = vmatpush1.msra.mxu0 0.0
    %1185 = vmatprep.subr.mxu0 0.0
    %1186 = vmatpush1.msra.mxu0 0.0
    %1187 = vmatprep.subr.mxu0 0.0
    %1188 = vmatpush1.msra.mxu0 0.0
    %1189 = vmatprep.subr.mxu0 0.0
    %1190 = vmatpush1.msra.mxu0 0.0
    %1191 = vmatprep.subr.mxu0 0.0
    %1192 = vmatpush1.msra.mxu0 0.0
    %1193 = vmatprep.subr.mxu0 0.0
    %1194 = vmatpush1.msra.mxu0 0.0
    %1195 = vmatprep.subr.mxu0 0.0
    %1196 = vmatpush1.msra.mxu0 0.0
    %1197 = vmatprep.subr.mxu0 0.0
    %1198 = vmatpush1.msra.mxu0 0.0
    %1199 = vmatprep.subr.mxu0 0.0
    %1200 = vmatpush1.msra.mxu0 0.0
    %1201 = vmatprep.subr.mxu0 0.0
    %1202 = vmatpush1.msra.mxu0 0.0
    %1203 = vmatprep.subr.mxu0 0.0
    %1204 = vmatpush1.msra.mxu0 0.0
    %1205 = vmatprep.subr.mxu0 0.0
    %1206 = vmatpush1.msra.mxu0 0.0
    %1207 = vmatprep.subr.mxu0 0.0
    %1208 = vmatpush1.msra.mxu0 0.0
    %1209 = vmatprep.subr.mxu0 0.0
    %1210 = vmatpush1.msra.mxu0 0.0
    %1211 = vmatprep.subr.mxu0 0.0
    %1212 = vmatpush1.msra.mxu0 0.0
    %1213 = vmatprep.subr.mxu0 0.0
    %1214 = vmatpush1.msra.mxu0 0.0
    %1215 = vmatprep.subr.mxu0 0.0
    %1216 = vmatpush1.msra.mxu0 0.0
    %1217 = vmatprep.subr.mxu0 0.0
    %1218 = vmatpush1.msra.mxu0 0.0
    %1219 = vmatprep.subr.mxu0 0.0
    %1220 = vmatpush1.msra.mxu0 0.0
    %1221 = vmatprep.subr.mxu0 0.0
    %1222 = vmatpush1.msra.mxu0 0.0
    %1223 = vmatprep.subr.mxu0 0.0
    %1224 = vmatpush1.msra.mxu0 0.0
    %1225 = vmatprep.subr.mxu0 0.0
    %1226 = vmatpush1.msra.mxu0 0.0
    %1227 = vmatprep.subr.mxu0 0.0
    %1228 = vmatpush1.msra.mxu0 0.0
    %1229 = vmatprep.subr.mxu0 0.0
    %1230 = vmatpush1.msra.mxu0 0.0
    %1231 = vmatprep.subr.mxu0 0.0
    %1232 = vmatpush1.msra.mxu0 0.0
    %1233 = vmatprep.mubr.f32.mxu0 0.0
    %1234 = vmatmul.mubr.f32.gmra.mrb[0].mxu0 %v1167
    %v1235 = vpop.f32.mrb[0].mxu0
    %v1236 = vadd.f32 %v655, %v1235
    %v1237 = vpop.f32.mrb[0].mxu0
    %1238 = vdwg.mxu0
    %v1239 = vadd.f32 %v497, %v1236
    %v1240 = vxor.u32 %v1239, 2147483648
    %v1241 = vmul.f32 %v1240, 1.442695
    %v1242 = vpow.pop %v1241
    %v1243 = vadd.f32 %v1242, 1.0
    %v1244 = vrcp.pop %v1243
    %v1245 = vmul.f32 1.0, %v1244
    %1247 = vrot.lane.b32.xlu0 %v1236, 64
    %v1248 = vpop.permute.xlu0 %1247
    %v1250 = vmul.f32 %v1245, %v1248
    %1252 = vrot.lane.b32.xlu0 %v1250, 64
    %v1253 = vpop.permute.xlu0 %1252
    %v1255 = vadd.f32 %v497, %v1253
    %v1256 = vtanh.pop %v1255
    %v1257 = vsub.f32 1.0, %v1245
    %1259 = vrot.lane.b32.xlu0 %v1256, 96
    %v1260 = vpop.permute.xlu0 %1259
    %v1262 = vmul.f32 %v1257, %v1260
    %v1263 = vmul.f32 %v1245, %v1163
    %v1264 = vadd.f32 %v1262, %v1263
    %1266 = vrot.lane.b32.xlu0 %v1264, 96
    %v1267 = vpop.permute.xlu0 %1266
    %v1268 = vsel %vm657, %v1267, 0
    %1270 = vmatprep.subr.mxu0 0.0
    %1271 = vmatpush1.msra.mxu0 %v39
    %1272 = vmatprep.subr.mxu0 0.0
    %1273 = vmatpush1.msra.mxu0 %v40
    %1274 = vmatprep.subr.mxu0 0.0
    %1275 = vmatpush1.msra.mxu0 %v41
    %1276 = vmatprep.subr.mxu0 0.0
    %1277 = vmatpush1.msra.mxu0 %v42
    %1278 = vmatprep.subr.mxu0 0.0
    %1279 = vmatpush1.msra.mxu0 0.0
    %1280 = vmatprep.subr.mxu0 0.0
    %1281 = vmatpush1.msra.mxu0 0.0
    %1282 = vmatprep.subr.mxu0 0.0
    %1283 = vmatpush1.msra.mxu0 0.0
    %1284 = vmatprep.subr.mxu0 0.0
    %1285 = vmatpush1.msra.mxu0 0.0
    %1286 = vmatprep.subr.mxu0 0.0
    %1287 = vmatpush1.msra.mxu0 0.0
    %1288 = vmatprep.subr.mxu0 0.0
    %1289 = vmatpush1.msra.mxu0 0.0
    %1290 = vmatprep.subr.mxu0 0.0
    %1291 = vmatpush1.msra.mxu0 0.0
    %1292 = vmatprep.subr.mxu0 0.0
    %1293 = vmatpush1.msra.mxu0 0.0
    %1294 = vmatprep.subr.mxu0 0.0
    %1295 = vmatpush1.msra.mxu0 0.0
    %1296 = vmatprep.subr.mxu0 0.0
    %1297 = vmatpush1.msra.mxu0 0.0
    %1298 = vmatprep.subr.mxu0 0.0
    %1299 = vmatpush1.msra.mxu0 0.0
    %1300 = vmatprep.subr.mxu0 0.0
    %1301 = vmatpush1.msra.mxu0 0.0
    %1302 = vmatprep.subr.mxu0 0.0
    %1303 = vmatpush1.msra.mxu0 0.0
    %1304 = vmatprep.subr.mxu0 0.0
    %1305 = vmatpush1.msra.mxu0 0.0
    %1306 = vmatprep.subr.mxu0 0.0
    %1307 = vmatpush1.msra.mxu0 0.0
    %1308 = vmatprep.subr.mxu0 0.0
    %1309 = vmatpush1.msra.mxu0 0.0
    %1310 = vmatprep.subr.mxu0 0.0
    %1311 = vmatpush1.msra.mxu0 0.0
    %1312 = vmatprep.subr.mxu0 0.0
    %1313 = vmatpush1.msra.mxu0 0.0
    %1314 = vmatprep.subr.mxu0 0.0
    %1315 = vmatpush1.msra.mxu0 0.0
    %1316 = vmatprep.subr.mxu0 0.0
    %1317 = vmatpush1.msra.mxu0 0.0
    %1318 = vmatprep.subr.mxu0 0.0
    %1319 = vmatpush1.msra.mxu0 0.0
    %1320 = vmatprep.subr.mxu0 0.0
    %1321 = vmatpush1.msra.mxu0 0.0
    %1322 = vmatprep.subr.mxu0 0.0
    %1323 = vmatpush1.msra.mxu0 0.0
    %1324 = vmatprep.subr.mxu0 0.0
    %1325 = vmatpush1.msra.mxu0 0.0
    %1326 = vmatprep.subr.mxu0 0.0
    %1327 = vmatpush1.msra.mxu0 0.0
    %1328 = vmatprep.subr.mxu0 0.0
    %1329 = vmatpush1.msra.mxu0 0.0
    %1330 = vmatprep.subr.mxu0 0.0
    %1331 = vmatpush1.msra.mxu0 0.0
    %1332 = vmatprep.subr.mxu0 0.0
    %1333 = vmatpush1.msra.mxu0 0.0
    %1334 = vmatprep.mubr.f32.mxu0 0.0
    %1335 = vmatmul.mubr.f32.gmra.mrb[0].mxu0 %v1268
    %v1336 = vpop.f32.mrb[0].mxu0
    %v1337 = vadd.f32 %v655, %v1336
    %v1338 = vpop.f32.mrb[0].mxu0
    %1339 = vdwg.mxu0
    %v1340 = vadd.f32 %v572, %v1337
    %v1341 = vxor.u32 %v1340, 2147483648
    %v1342 = vmul.f32 %v1341, 1.442695
    %v1343 = vpow.pop %v1342
    %v1344 = vadd.f32 %v1343, 1.0
    %v1345 = vrcp.pop %v1344
    %v1346 = vmul.f32 1.0, %v1345
    %1348 = vrot.lane.b32.xlu0 %v1337, 64
    %v1349 = vpop.permute.xlu0 %1348
    %v1351 = vmul.f32 %v1346, %v1349
    %1353 = vrot.lane.b32.xlu0 %v1351, 64
    %v1354 = vpop.permute.xlu0 %1353
    %v1356 = vadd.f32 %v572, %v1354
    %v1357 = vtanh.pop %v1356
    %v1358 = vsub.f32 1.0, %v1346
    %1360 = vrot.lane.b32.xlu0 %v1357, 96
    %v1361 = vpop.permute.xlu0 %1360
    %v1363 = vmul.f32 %v1358, %v1361
    %v1364 = vmul.f32 %v1346, %v1264
    %v1365 = vadd.f32 %v1363, %v1364
    %1367 = vrot.lane.b32.xlu0 %v1365, 96
    %v1368 = vpop.permute.xlu0 %1367
    %v1369 = vsel %vm657, %v1368, 0
    %1371 = vmatprep.subr.mxu0 0.0
    %1372 = vmatpush1.msra.mxu0 %v39
    %1373 = vmatprep.subr.mxu0 0.0
    %1374 = vmatpush1.msra.mxu0 %v40
    %1375 = vmatprep.subr.mxu0 0.0
    %1376 = vmatpush1.msra.mxu0 %v41
    %1377 = vmatprep.subr.mxu0 0.0
    %1378 = vmatpush1.msra.mxu0 %v42
    %1379 = vmatprep.subr.mxu0 0.0
    %1380 = vmatpush1.msra.mxu0 0.0
    %1381 = vmatprep.subr.mxu0 0.0
    %1382 = vmatpush1.msra.mxu0 0.0
    %1383 = vmatprep.subr.mxu0 0.0
    %1384 = vmatpush1.msra.mxu0 0.0
    %1385 = vmatprep.subr.mxu0 0.0
    %1386 = vmatpush1.msra.mxu0 0.0
    %1387 = vmatprep.subr.mxu0 0.0
    %1388 = vmatpush1.msra.mxu0 0.0
    %1389 = vmatprep.subr.mxu0 0.0
    %1390 = vmatpush1.msra.mxu0 0.0
    %1391 = vmatprep.subr.mxu0 0.0
    %1392 = vmatpush1.msra.mxu0 0.0
    %1393 = vmatprep.subr.mxu0 0.0
    %1394 = vmatpush1.msra.mxu0 0.0
    %1395 = vmatprep.subr.mxu0 0.0
    %1396 = vmatpush1.msra.mxu0 0.0
    %1397 = vmatprep.subr.mxu0 0.0
    %1398 = vmatpush1.msra.mxu0 0.0
    %1399 = vmatprep.subr.mxu0 0.0
    %1400 = vmatpush1.msra.mxu0 0.0
    %1401 = vmatprep.subr.mxu0 0.0
    %1402 = vmatpush1.msra.mxu0 0.0
    %1403 = vmatprep.subr.mxu0 0.0
    %1404 = vmatpush1.msra.mxu0 0.0
    %1405 = vmatprep.subr.mxu0 0.0
    %1406 = vmatpush1.msra.mxu0 0.0
    %1407 = vmatprep.subr.mxu0 0.0
    %1408 = vmatpush1.msra.mxu0 0.0
    %1409 = vmatprep.subr.mxu0 0.0
    %1410 = vmatpush1.msra.mxu0 0.0
    %1411 = vmatprep.subr.mxu0 0.0
    %1412 = vmatpush1.msra.mxu0 0.0
    %1413 = vmatprep.subr.mxu0 0.0
    %1414 = vmatpush1.msra.mxu0 0.0
    %1415 = vmatprep.subr.mxu0 0.0
    %1416 = vmatpush1.msra.mxu0 0.0
    %1417 = vmatprep.subr.mxu0 0.0
    %1418 = vmatpush1.msra.mxu0 0.0
    %1419 = vmatprep.subr.mxu0 0.0
    %1420 = vmatpush1.msra.mxu0 0.0
    %1421 = vmatprep.subr.mxu0 0.0
    %1422 = vmatpush1.msra.mxu0 0.0
    %1423 = vmatprep.subr.mxu0 0.0
    %1424 = vmatpush1.msra.mxu0 0.0
    %1425 = vmatprep.subr.mxu0 0.0
    %1426 = vmatpush1.msra.mxu0 0.0
    %1427 = vmatprep.subr.mxu0 0.0
    %1428 = vmatpush1.msra.mxu0 0.0
    %1429 = vmatprep.subr.mxu0 0.0
    %1430 = vmatpush1.msra.mxu0 0.0
    %1431 = vmatprep.subr.mxu0 0.0
    %1432 = vmatpush1.msra.mxu0 0.0
    %1433 = vmatprep.subr.mxu0 0.0
    %1434 = vmatpush1.msra.mxu0 0.0
    %1435 = vmatprep.mubr.f32.mxu0 0.0
    %1436 = vmatmul.mubr.f32.gmra.mrb[0].mxu0 %v1369
    %v1437 = vpop.f32.mrb[0].mxu0
    %v1438 = vadd.f32 %v655, %v1437
    %v1439 = vpop.f32.mrb[0].mxu0
    %1440 = vdwg.mxu0
    %v1441 = vadd.f32 %v647, %v1438
    %v1442 = vxor.u32 %v1441, 2147483648
    %v1443 = vmul.f32 %v1442, 1.442695
    %v1444 = vpow.pop %v1443
    %v1445 = vadd.f32 %v1444, 1.0
    %v1446 = vrcp.pop %v1445
    %v1447 = vmul.f32 1.0, %v1446
    %1449 = vrot.lane.b32.xlu0 %v1438, 64
    %v1450 = vpop.permute.xlu0 %1449
    %v1452 = vmul.f32 %v1447, %v1450
    %1454 = vrot.lane.b32.xlu0 %v1452, 64
    %v1455 = vpop.permute.xlu0 %1454
    %v1457 = vadd.f32 %v647, %v1455
    %v1458 = vtanh.pop %v1457
    %v1459 = vsub.f32 1.0, %v1447
    %1461 = vrot.lane.b32.xlu0 %v1458, 96
    %v1462 = vpop.permute.xlu0 %1461
    %v1464 = vmul.f32 %v1459, %v1462
    %v1465 = vmul.f32 %v1447, %v1365
    %v1466 = vadd.f32 %v1464, %v1465
    %1468 = vrot.lane.b32.xlu0 %v961, 32
    %v1469 = vpop.permute.xlu0 %1468
    %1471 = vrot.lane.b32.xlu0 %v1062, 64
    %v1472 = vpop.permute.xlu0 %1471
    %1475 = vrot.lane.b32.xlu0 %v1365, 32
    %v1476 = vpop.permute.xlu0 %1475
    %1479 = vrot.lane.b32.xlu0 %v1466, 64
    %v1480 = vpop.permute.xlu0 %1479
    %v1482 = vsel %vm657, %v762, %v860
    %vm1483 = vcmask 523264
    %v1484 = vsel %vm1483, %v1482, %v1469
    %vm1485 = vcmask 785408
    %v1486 = vsel %vm1485, %v1484, %v1472
    %v1487 = vsel %vm657, %v1166, %v1264
    %v1488 = vsel %vm1483, %v1487, %v1476
    %v1489 = vsel %vm1485, %v1488, %v1480
    %v1490 = vld [vmem:[%s6] sm:$0xff]
    %v1491 = vld [vmem:[%s6 + $0x8] sm:$0xff]
    %v1492 = vld [vmem:[%s6 + $0x10] sm:$0xff]
    %v1493 = vld [vmem:[%s6 + $0x18] sm:$0xff]
    %v1494 = vld [vmem:[%s6 + $0x20] sm:$0xff]
    %v1495 = vld [vmem:[%s6 + $0x28] sm:$0xff]
    %v1496 = vld [vmem:[%s6 + $0x30] sm:$0xff]
    %v1497 = vld [vmem:[%s6 + $0x38] sm:$0xff]
    %v1498 = vld [vmem:[%s6 + $0x40] sm:$0xff]
    %v1499 = vld [vmem:[%s6 + $0x48] sm:$0xff]
    %v1500 = vld [vmem:[%s6 + $0x50] sm:$0xff]
    %v1501 = vld [vmem:[%s6 + $0x58] sm:$0xff]
    %v1502 = vld [vmem:[%s6 + $0x60] sm:$0xff]
    %v1503 = vld [vmem:[%s6 + $0x68] sm:$0xff]
    %v1504 = vld [vmem:[%s6 + $0x70] sm:$0xff]
    %v1505 = vld [vmem:[%s6 + $0x78] sm:$0xff]
    %v1506 = vld [vmem:[%s6 + $0x80] sm:$0xff]
    %v1507 = vld [vmem:[%s6 + $0x88] sm:$0xff]
    %v1508 = vld [vmem:[%s6 + $0x90] sm:$0xff]
    %v1509 = vld [vmem:[%s6 + $0x98] sm:$0xff]
    %v1510 = vld [vmem:[%s6 + $0xa0] sm:$0xff]
    %v1511 = vld [vmem:[%s6 + $0xa8] sm:$0xff]
    %v1512 = vld [vmem:[%s6 + $0xb0] sm:$0xff]
    %v1513 = vld [vmem:[%s6 + $0xb8] sm:$0xff]
    %v1514 = vld [vmem:[%s6 + $0xc0] sm:$0xff]
    %v1515 = vld [vmem:[%s6 + $0xc8] sm:$0xff]
    %v1516 = vld [vmem:[%s6 + $0xd0] sm:$0xff]
    %v1517 = vld [vmem:[%s6 + $0xd8] sm:$0xff]
    %v1518 = vld [vmem:[%s6 + $0xe0] sm:$0xff]
    %v1519 = vld [vmem:[%s6 + $0xe8] sm:$0xff]
    %v1520 = vld [vmem:[%s6 + $0xf0] sm:$0xff]
    %v1521 = vld [vmem:[%s6 + $0xf8] sm:$0xff]
    %v1522 = vld [vmem:[%s7] sm:$0x1]
    %v1524 = vlaneseq
    %v1525 = vshrl.u32 %v1524, 7
    %v1526 = vsub.s32 0, %v1525
    %v1527 = vrot.slane %v1522, %v1526
    %1529 = vmatprep.subr.mxu0 0.0
    %1530 = vmatpush1.msra.mxu0 %v1490
    %1531 = vmatprep.subr.mxu0 0.0
    %1532 = vmatpush1.msra.mxu0 %v1491
    %1533 = vmatprep.subr.mxu0 0.0
    %1534 = vmatpush1.msra.mxu0 %v1492
    %1535 = vmatprep.subr.mxu0 0.0
    %1536 = vmatpush1.msra.mxu0 %v1493
    %1537 = vmatprep.subr.mxu0 0.0
    %1538 = vmatpush1.msra.mxu0 %v1494
    %1539 = vmatprep.subr.mxu0 0.0
    %1540 = vmatpush1.msra.mxu0 %v1495
    %1541 = vmatprep.subr.mxu0 0.0
    %1542 = vmatpush1.msra.mxu0 %v1496
    %1543 = vmatprep.subr.mxu0 0.0
    %1544 = vmatpush1.msra.mxu0 %v1497
    %1545 = vmatprep.subr.mxu0 0.0
    %1546 = vmatpush1.msra.mxu0 %v1498
    %1547 = vmatprep.subr.mxu0 0.0
    %1548 = vmatpush1.msra.mxu0 %v1499
    %1549 = vmatprep.subr.mxu0 0.0
    %1550 = vmatpush1.msra.mxu0 %v1500
    %1551 = vmatprep.subr.mxu0 0.0
    %1552 = vmatpush1.msra.mxu0 %v1501
    %1553 = vmatprep.subr.mxu0 0.0
    %1554 = vmatpush1.msra.mxu0 %v1502
    %1555 = vmatprep.subr.mxu0 0.0
    %1556 = vmatpush1.msra.mxu0 %v1503
    %1557 = vmatprep.subr.mxu0 0.0
    %1558 = vmatpush1.msra.mxu0 %v1504
    %1559 = vmatprep.subr.mxu0 0.0
    %1560 = vmatpush1.msra.mxu0 %v1505
    %1561 = vmatprep.subr.mxu0 0.0
    %1562 = vmatpush1.msra.mxu0 %v1506
    %1563 = vmatprep.subr.mxu0 0.0
    %1564 = vmatpush1.msra.mxu0 %v1507
    %1565 = vmatprep.subr.mxu0 0.0
    %1566 = vmatpush1.msra.mxu0 %v1508
    %1567 = vmatprep.subr.mxu0 0.0
    %1568 = vmatpush1.msra.mxu0 %v1509
    %1569 = vmatprep.subr.mxu0 0.0
    %1570 = vmatpush1.msra.mxu0 %v1510
    %1571 = vmatprep.subr.mxu0 0.0
    %1572 = vmatpush1.msra.mxu0 %v1511
    %1573 = vmatprep.subr.mxu0 0.0
    %1574 = vmatpush1.msra.mxu0 %v1512
    %1575 = vmatprep.subr.mxu0 0.0
    %1576 = vmatpush1.msra.mxu0 %v1513
    %1577 = vmatprep.subr.mxu0 0.0
    %1578 = vmatpush1.msra.mxu0 %v1514
    %1579 = vmatprep.subr.mxu0 0.0
    %1580 = vmatpush1.msra.mxu0 %v1515
    %1581 = vmatprep.subr.mxu0 0.0
    %1582 = vmatpush1.msra.mxu0 %v1516
    %1583 = vmatprep.subr.mxu0 0.0
    %1584 = vmatpush1.msra.mxu0 %v1517
    %1585 = vmatprep.subr.mxu0 0.0
    %1586 = vmatpush1.msra.mxu0 %v1518
    %1587 = vmatprep.subr.mxu0 0.0
    %1588 = vmatpush1.msra.mxu0 %v1519
    %1589 = vmatprep.subr.mxu0 0.0
    %1590 = vmatpush1.msra.mxu0 %v1520
    %1591 = vmatprep.subr.mxu0 0.0
    %1592 = vmatpush1.msra.mxu0 %v1521
    %1593 = vmatprep.mubr.f32.mxu0 %v1489
    %1594 = vmatmul.mubr.f32.gmra.mrb[0].mxu0 %v1486
    %v1595 = vpop.f32.mrb[0].mxu0
    %v1596 = vadd.f32 %v1527, %v1595
    %v1597 = vpop.f32.mrb[0].mxu0
    %1598 = vdwg.mxu0
    %v1599 = vmax.f32 %v1596, 0.0
    %v1600 = vld [vmem:[%s8] sm:$0xff]
    %v1601 = vld [vmem:[%s8 + $0x8] sm:$0xff]
    %v1602 = vld [vmem:[%s8 + $0x10] sm:$0xff]
    %v1603 = vld [vmem:[%s8 + $0x18] sm:$0xff]
    %v1604 = vld [vmem:[%s9] sm:$0x1]
    %v1606 = vlaneseq
    %v1607 = vshrl.u32 %v1606, 7
    %v1608 = vsub.s32 0, %v1607
    %v1609 = vrot.slane %v1604, %v1608
    %v1612 = vsel %vm657, %v1599, 0
    %1614 = vmatprep.subr.mxu0 0.0
    %1615 = vmatpush1.msra.mxu0 %v1600
    %1616 = vmatprep.subr.mxu0 0.0
    %1617 = vmatpush1.msra.mxu0 %v1601
    %1618 = vmatprep.subr.mxu0 0.0
    %1619 = vmatpush1.msra.mxu0 %v1602
    %1620 = vmatprep.subr.mxu0 0.0
    %1621 = vmatpush1.msra.mxu0 %v1603
    %1622 = vmatprep.subr.mxu0 0.0
    %1623 = vmatpush1.msra.mxu0 0.0
    %1624 = vmatprep.subr.mxu0 0.0
    %1625 = vmatpush1.msra.mxu0 0.0
    %1626 = vmatprep.subr.mxu0 0.0
    %1627 = vmatpush1.msra.mxu0 0.0
    %1628 = vmatprep.subr.mxu0 0.0
    %1629 = vmatpush1.msra.mxu0 0.0
    %1630 = vmatprep.subr.mxu0 0.0
    %1631 = vmatpush1.msra.mxu0 0.0
    %1632 = vmatprep.subr.mxu0 0.0
    %1633 = vmatpush1.msra.mxu0 0.0
    %1634 = vmatprep.subr.mxu0 0.0
    %1635 = vmatpush1.msra.mxu0 0.0
    %1636 = vmatprep.subr.mxu0 0.0
    %1637 = vmatpush1.msra.mxu0 0.0
    %1638 = vmatprep.subr.mxu0 0.0
    %1639 = vmatpush1.msra.mxu0 0.0
    %1640 = vmatprep.subr.mxu0 0.0
    %1641 = vmatpush1.msra.mxu0 0.0
    %1642 = vmatprep.subr.mxu0 0.0
    %1643 = vmatpush1.msra.mxu0 0.0
    %1644 = vmatprep.subr.mxu0 0.0
    %1645 = vmatpush1.msra.mxu0 0.0
    %1646 = vmatprep.subr.mxu0 0.0
    %1647 = vmatpush1.msra.mxu0 0.0
    %1648 = vmatprep.subr.mxu0 0.0
    %1649 = vmatpush1.msra.mxu0 0.0
    %1650 = vmatprep.subr.mxu0 0.0
    %1651 = vmatpush1.msra.mxu0 0.0
    %1652 = vmatprep.subr.mxu0 0.0
    %1653 = vmatpush1.msra.mxu0 0.0
    %1654 = vmatprep.subr.mxu0 0.0
    %1655 = vmatpush1.msra.mxu0 0.0
    %1656 = vmatprep.subr.mxu0 0.0
    %1657 = vmatpush1.msra.mxu0 0.0
    %1658 = vmatprep.subr.mxu0 0.0
    %1659 = vmatpush1.msra.mxu0 0.0
    %1660 = vmatprep.subr.mxu0 0.0
    %1661 = vmatpush1.msra.mxu0 0.0
    %1662 = vmatprep.subr.mxu0 0.0
    %1663 = vmatpush1.msra.mxu0 0.0
    %1664 = vmatprep.subr.mxu0 0.0
    %1665 = vmatpush1.msra.mxu0 0.0
    %1666 = vmatprep.subr.mxu0 0.0
    %1667 = vmatpush1.msra.mxu0 0.0
    %1668 = vmatprep.subr.mxu0 0.0
    %1669 = vmatpush1.msra.mxu0 0.0
    %1670 = vmatprep.subr.mxu0 0.0
    %1671 = vmatpush1.msra.mxu0 0.0
    %1672 = vmatprep.subr.mxu0 0.0
    %1673 = vmatpush1.msra.mxu0 0.0
    %1674 = vmatprep.subr.mxu0 0.0
    %1675 = vmatpush1.msra.mxu0 0.0
    %1676 = vmatprep.subr.mxu0 0.0
    %1677 = vmatpush1.msra.mxu0 0.0
    %1678 = vmatprep.mubr.f32.mxu0 0.0
    %1679 = vmatmul.mubr.f32.gmra.mrb[0].mxu0 %v1612
    %v1680 = vpop.f32.mrb[0].mxu0
    %v1681 = vadd.f32 %v1609, %v1680
    %v1682 = vpop.f32.mrb[0].mxu0
    %1683 = vdwg.mxu0
    %vm1684 = vcmask 74752
    %v1685 = vsel %vm1684, %v1681, -inf
    %1686 = vmax.xlane.f32.xlu0 %v1685
    %v1687 = vpop.xlane.xlu0 %1686
    %v1688 = vsub.f32 %v1681, %v1687
    %v1689 = vmul.f32 %v1688, 1.442695
    %v1690 = vpow.pop %v1689
    %v1691 = vsel %vm1684, %v1690, 0.0
    %1692 = vadd.xlane.f32.xlu0 %v1691
    %v1693 = vpop.xlane.xlu0 %1692
    %v1694 = vlog2.pop %v1693
    %v1695 = vmul.f32 %v1694, 0.6931472
    %v1696 = vsub.f32 %v1688, %v1695
    %1697 = vst.msk [vmem:[#allocation2] sm:$0x3] %vm1684, %v1696
    // Predicated region
    $region42: #{tpu_custom_call.1} parent=1 // pred_check
      _
    $region43: #{tpu_custom_call.1} parent=1 // pred_check_branch
      %1699 = sbr.rel (0) target = $region45
    $region44: #{tpu_custom_call.1} parent=1 // pred_region
      %s1701 = ssub.s32 32, 32
      %1702 = vsyncadd [#allocation3], %s1701
      %s1704 = sshll.u32 [#allocation2], 4
      %s1705 = int_to_ptr.vmem [resolvable:$true] %s1704
      %1707 = dma.vmem_to_hbm [thread:$0]  %s1705, 32, %s10, [#allocation3]
    $region45: #{tpu_custom_call.1} parent=1 // pred_fallthru
      _
    // Predicated region
    $region46: #{tpu_custom_call.1} parent=1 // pred_check
      _
    $region47: #{tpu_custom_call.1} parent=1 // pred_check_branch
      %1709 = sbr.rel (0) target = $region49
    $region48: #{tpu_custom_call.1} parent=1 // pred_region
      %1710 = dma.done [#allocation3], 32
    $region49: #{tpu_custom_call.1} parent=1 // pred_fallthru
      _
    %1711 = vsyncpa [#allocation3], 1

</llo_original>
